<compile_context>
chip_gen: v7x
topology: tpu7x:2x2x1
jax: 0.10.0
libtpu: 0.0.40
codegen_flags: <defaults>
</compile_context>

<pallas_src>
import functools

import jax
import jax.numpy as jnp
from jax.experimental import pallas as pl
from jax.experimental.pallas import tpu as pltpu


def _layernorm(x, g, b, eps=1e-5):
    mu = jnp.mean(x, axis=-1, keepdims=True)
    var = jnp.mean((x - mu) ** 2, axis=-1, keepdims=True)
    return (x - mu) * jax.lax.rsqrt(var + eps) * g + b


def _transformer_kernel(num_heads, ff_chunk,
                        x_ref,
                        ln1_g_ref, ln1_b_ref,
                        w_in_ref, b_in_ref,
                        w_out_ref, b_out_ref,
                        ln2_g_ref, ln2_b_ref,
                        w_fc_ref, b_fc_ref,
                        w_proj_ref, b_proj_ref,
                        o_ref, ctx_ref):
    """Fused transformer: grid = (N//Bn, layers); o_ref is the resident x."""
    l = pl.program_id(1)

    # Layer 0: initialize the resident output block from the input x block.
    @pl.when(l == 0)
    def _():
        o_ref[...] = x_ref[...]

    x3 = o_ref[...]                                  # (Bn, L, C) f32 residual
    Bn, L, C = x3.shape
    M = Bn * L
    H = num_heads
    Dh = C // H
    bf16 = jnp.bfloat16
    f32 = jnp.float32

    x = x3.reshape(M, C)                             # fold batch into M

    # ---------------- attention branch ----------------
    xn = _layernorm(x, ln1_g_ref[0], ln1_b_ref[0]).astype(bf16)
    # 1/sqrt(Dh) is pre-folded into the Q columns of w_in/b_in on the host.
    qkv = jnp.dot(xn, w_in_ref[0], preferred_element_type=f32) + b_in_ref[0]
    qkv_b = qkv.astype(bf16).reshape(Bn, L, 3 * C)   # single cast, batched view

    for h in range(H):                               # static small loop over heads
        q = qkv_b[:, :, h * Dh:(h + 1) * Dh]
        k = qkv_b[:, :, C + h * Dh:C + (h + 1) * Dh]
        v = qkv_b[:, :, 2 * C + h * Dh:2 * C + (h + 1) * Dh]

        s = jnp.einsum('bld,bmd->blm', q, k, preferred_element_type=f32)  # (Bn,L,L)
        s = s - jnp.max(s, axis=-1, keepdims=True)                         # stable softmax (f32)
        p = jnp.exp(s)
        p = p * pl.reciprocal(jnp.sum(p, axis=-1, keepdims=True), approx=True)

        ctx = jnp.einsum('blm,bmd->bld', p.astype(bf16), v,
                         preferred_element_type=f32)                       # (Bn,L,Dh)
        ctx_ref[:, :, h * Dh:(h + 1) * Dh] = ctx.astype(bf16)

    # Single K=C output projection over all heads / batches.
    attn_out = (jnp.dot(ctx_ref[...].reshape(M, C), w_out_ref[0],
                        preferred_element_type=f32) + b_out_ref[0])
    x = x + attn_out

    # ---------------- MLP branch ----------------
    xn2 = _layernorm(x, ln2_g_ref[0], ln2_b_ref[0]).astype(bf16)
    FF = w_fc_ref.shape[-1]
    y = jnp.zeros((M, C), f32) + b_proj_ref[0]
    for c0 in range(0, FF, ff_chunk):                # chunk the hidden dim
        c1 = min(c0 + ff_chunk, FF)
        hm = (jnp.dot(xn2, w_fc_ref[0, :, c0:c1], preferred_element_type=f32)
              + b_fc_ref[0, :, c0:c1])
        hm = hm * jax.nn.sigmoid(1.702 * hm)         # QuickGELU in f32
        y = y + jnp.dot(hm.astype(bf16), w_proj_ref[0, c0:c1, :],
                        preferred_element_type=f32)

    o_ref[...] = (x + y).reshape(Bn, L, C)


def _vmem_estimate_bytes(bn, L, C, ff_chunk):
    """Rough VMEM footprint: double-buffered inputs + resident scratch + temps."""
    FF = 4 * C
    M = bn * L
    w_bf16 = 2 * (C * 3 * C + C * C + C * FF + FF * C)       # big weights (bf16)
    vec_f32 = 4 * (2 * C + 3 * C + C + 2 * C + FF + C)       # LN + biases (f32)
    x_in = 4 * M * C                                         # f32 input block
    dbuf = 2 * (w_bf16 + vec_f32 + x_in)                     # double-buffered inputs
    out_blk = 2 * 4 * M * C                                  # output block buffers
    ctx = 2 * M * C                                          # bf16 ctx scratch (resident)
    act = (4 * (3 * M * C + M * 3 * C + bn * L * L + M * ff_chunk)
           + 2 * (2 * M * C + M * 3 * C + M * ff_chunk))     # live temporaries
    return dbuf + out_blk + ctx + act


def _pick_batch_block(N, L, C, ff_chunk, budget):
    """Largest batch block <= 8 dividing N that fits, preferring >= 2 grid blocks."""
    fitting = [bn for bn in range(1, min(N, 8) + 1)
               if N % bn == 0 and _vmem_estimate_bytes(bn, L, C, ff_chunk) <= budget]
    if not fitting:
        return 1
    multi = [bn for bn in fitting if N // bn >= 2]
    return max(multi) if multi else max(fitting)


def custom_transformer_forward(x_lnc, layer_params, num_heads):
    """x_lnc: (L, N, C) like PyTorch. Returns (L, N, C) float32."""
    x = jnp.transpose(x_lnc, (1, 0, 2)).astype(jnp.float32)   # -> (N, L, C)
    N, L, C = x.shape
    layers = len(layer_params)
    bf16 = jnp.bfloat16
    FF = 4 * C
    ff_chunk = min(FF, 2048)
    scale = (C // num_heads) ** -0.5

    # Physical VMEM (fallback 64 MiB = v7x); leave 8 MiB headroom for compiler scratch.
    try:
        phys_vmem = int(pltpu.get_tpu_info().vmem_capacity_bytes)
    except Exception:
        phys_vmem = 64 * 1024 * 1024
    vmem_ceiling = max(phys_vmem - (8 << 20), 24 << 20)

    Bn = _pick_batch_block(N, L, C, ff_chunk, vmem_ceiling)
    est = _vmem_estimate_bytes(Bn, L, C, ff_chunk)
    vmem_limit = int(min(max(est + (4 << 20), 32 << 20), vmem_ceiling))

    def stack(name):
        return jnp.stack([p[name] for p in layer_params], axis=0)

    def row(v):  # (layers, D) -> (layers, 1, D) f32
        return v.reshape(layers, 1, v.shape[-1]).astype(jnp.float32)

    # Fold the attention scale into the Q columns of the input projection.
    w_in = stack("w_in").astype(jnp.float32)
    w_in = w_in.at[:, :, :C].multiply(scale).astype(bf16)
    b_in = stack("b_in").astype(jnp.float32)
    b_in = b_in.at[:, :C].multiply(scale)

    weights = [
        row(stack("ln1_g")), row(stack("ln1_b")),
        w_in, row(b_in),
        stack("w_out").astype(bf16), row(stack("b_out")),
        row(stack("ln2_g")), row(stack("ln2_b")),
        stack("w_fc").astype(bf16), row(stack("b_fc")),
        stack("w_proj").astype(bf16), row(stack("b_proj")),
    ]

    in_specs = [pl.BlockSpec((Bn, L, C), lambda n, l: (n, 0, 0))]
    in_specs += [pl.BlockSpec((1,) + w.shape[1:], lambda n, l: (l, 0, 0))
                 for w in weights]

    out = pl.pallas_call(
        functools.partial(_transformer_kernel, num_heads, ff_chunk),
        out_shape=jax.ShapeDtypeStruct((N, L, C), jnp.float32),
        grid=(N // Bn, layers),
        in_specs=in_specs,
        out_specs=pl.BlockSpec((Bn, L, C), lambda n, l: (n, 0, 0)),
        scratch_shapes=[pltpu.VMEM((Bn, L, C), bf16)],
        compiler_params=pltpu.CompilerParams(
            dimension_semantics=("parallel", "arbitrary"),
            vmem_limit_bytes=vmem_limit),
    )(x, *weights)
    return jnp.transpose(out, (1, 0, 2))                      # -> (L, N, C)


# -------------------- pure-JAX reference (PyTorch semantics, f32) -------------
def _ref_block(x_lnc, p, num_heads):
    L, N, C = x_lnc.shape
    Dh = C // num_heads
    scale = Dh ** -0.5

    def ln(x, g, b):
        mu = jnp.mean(x, axis=-1, keepdims=True)
        var = jnp.mean((x - mu) ** 2, axis=-1, keepdims=True)
        return (x - mu) / jnp.sqrt(var + 1e-5) * g + b

    xn = ln(x_lnc, p["ln1_g"], p["ln1_b"])
    qkv = xn @ p["w_in"] + p["b_in"]               # (L, N, 3C)
    q, k, v = jnp.split(qkv, 3, axis=-1)

    def to_heads(t):
        t = t.reshape(L, N * num_heads, Dh)
        return jnp.transpose(t, (1, 0, 2))
    qh, kh, vh = to_heads(q) * scale, to_heads(k), to_heads(v)
    attn = jax.nn.softmax(jnp.einsum("bld,bmd->blm", qh, kh), axis=-1)
    o = jnp.einsum("blm,bmd->bld", attn, vh)       # (N*H, L, Dh)
    o = jnp.transpose(o, (1, 0, 2)).reshape(L, N, C)
    o = o @ p["w_out"] + p["b_out"]
    x = x_lnc + o
    xn2 = ln(x, p["ln2_g"], p["ln2_b"])
    h = xn2 @ p["w_fc"] + p["b_fc"]
    h = h * jax.nn.sigmoid(1.702 * h)
    return x + h @ p["w_proj"] + p["b_proj"]


def _ref_forward(x_lnc, layer_params, num_heads):
    x = x_lnc
    for p in layer_params:
        x = _ref_block(x, p, num_heads)
    return x


# ----------------------------- parameter init ---------------------------------
def init_params(key, width, layers):
    layer_params = []
    for i in range(layers):
        keys = jax.random.split(jax.random.fold_in(key, i), 4)
        p = {
            "ln1_g": jnp.ones((width,), jnp.float32),
            "ln1_b": jnp.zeros((width,), jnp.float32),
            "w_in": 0.02 * jax.random.normal(keys[0], (width, 3 * width), jnp.float32),
            "b_in": jnp.zeros((3 * width,), jnp.float32),
            "w_out": 0.02 * jax.random.normal(keys[1], (width, width), jnp.float32),
            "b_out": jnp.zeros((width,), jnp.float32),
            "ln2_g": jnp.ones((width,), jnp.float32),
            "ln2_b": jnp.zeros((width,), jnp.float32),
            "w_fc": 0.02 * jax.random.normal(keys[2], (width, 4 * width), jnp.float32),
            "b_fc": jnp.zeros((4 * width,), jnp.float32),
            "w_proj": 0.02 * jax.random.normal(keys[3], (4 * width, width), jnp.float32),
            "b_proj": jnp.zeros((width,), jnp.float32),
        }
        layer_params.append(p)
    return layer_params


if __name__ == "__main__":
    # Small shapes consistent with the module: CustomTransformer(width=32, layers=2, heads=4)
    L, N, C = 8, 4, 32
    layers, heads = 2, 4

    key = jax.random.PRNGKey(0)
    x = jax.random.normal(jax.random.fold_in(key, 1234), (L, N, C), jnp.float32)
    params = init_params(key, C, layers)

    out = custom_transformer_forward(x, params, heads)
    out = jax.block_until_ready(out)

    ref = _ref_forward(x, params, heads)
    assert out.shape == (L, N, C)
    # bf16 matmul operands -> loosen tolerance vs the f32 reference.
    err = float(jnp.max(jnp.abs(out - ref)))
    assert jnp.allclose(out, ref, atol=1e-2, rtol=1e-2), (
        "mismatch vs reference, max abs err = %f" % err)

    print("KERNEL_OK")
</pallas_src>

<mosaic_0001>
module attributes {stable_mosaic.version = 11 : i64} {
  func.func @_transformer_kernel(%arg0: i32, %arg1: i32, %arg2: memref<2x8x32xf32, #tpu.memory_space<vmem>>, %arg3: memref<1x1x32xf32, #tpu.memory_space<vmem>>, %arg4: memref<1x1x32xf32, #tpu.memory_space<vmem>>, %arg5: memref<1x32x96xbf16, #tpu.memory_space<vmem>>, %arg6: memref<1x1x96xf32, #tpu.memory_space<vmem>>, %arg7: memref<1x32x32xbf16, #tpu.memory_space<vmem>>, %arg8: memref<1x1x32xf32, #tpu.memory_space<vmem>>, %arg9: memref<1x1x32xf32, #tpu.memory_space<vmem>>, %arg10: memref<1x1x32xf32, #tpu.memory_space<vmem>>, %arg11: memref<1x32x128xbf16, #tpu.memory_space<vmem>>, %arg12: memref<1x1x128xf32, #tpu.memory_space<vmem>>, %arg13: memref<1x128x32xbf16, #tpu.memory_space<vmem>>, %arg14: memref<1x1x32xf32, #tpu.memory_space<vmem>>, %arg15: memref<2x8x32xf32, #tpu.memory_space<vmem>>, %arg16: memref<2x8x32xbf16, #tpu.memory_space<vmem>>) attributes {dimension_semantics = [#tpu.dimension_semantics<parallel>, #tpu.dimension_semantics<arbitrary>], iteration_bounds = array<i64: 2, 2>, scalar_prefetch = 0 : i64, scratch_operands = 1 : i64, tpu.core_type = #tpu.core_type<tc>, window_params = [{transform_indices = @transform_0, window_bounds = array<i64: 2, 8, 32>}, {transform_indices = @transform_1, window_bounds = array<i64: 1, 1, 32>}, {transform_indices = @transform_2, window_bounds = array<i64: 1, 1, 32>}, {transform_indices = @transform_3, window_bounds = array<i64: 1, 32, 96>}, {transform_indices = @transform_4, window_bounds = array<i64: 1, 1, 96>}, {transform_indices = @transform_5, window_bounds = array<i64: 1, 32, 32>}, {transform_indices = @transform_6, window_bounds = array<i64: 1, 1, 32>}, {transform_indices = @transform_7, window_bounds = array<i64: 1, 1, 32>}, {transform_indices = @transform_8, window_bounds = array<i64: 1, 1, 32>}, {transform_indices = @transform_9, window_bounds = array<i64: 1, 32, 128>}, {transform_indices = @transform_10, window_bounds = array<i64: 1, 1, 128>}, {transform_indices = @transform_11, window_bounds = array<i64: 1, 128, 32>}, {transform_indices = @transform_12, window_bounds = array<i64: 1, 1, 32>}, {transform_indices = @transform_13, window_bounds = array<i64: 2, 8, 32>}]} {
    %c0_i32 = arith.constant 0 : i32
    %0 = arith.cmpi eq, %arg1, %c0_i32 : i32
    %1 = arith.extui %0 : i1 to i32
    %c0_i32_0 = arith.constant 0 : i32
    %2 = arith.cmpi ne, %1, %c0_i32_0 : i32
    scf.if %2 {
      %c0_86 = arith.constant 0 : index
      %c0_87 = arith.constant 0 : index
      %c0_88 = arith.constant 0 : index
      %178 = vector.load %arg2[%c0_86, %c0_87, %c0_88] : memref<2x8x32xf32, #tpu.memory_space<vmem>>, vector<2x8x32xf32>
      %c0_89 = arith.constant 0 : index
      %c0_90 = arith.constant 0 : index
      %c0_91 = arith.constant 0 : index
      %179 = vector.load %arg15[%c0_89, %c0_90, %c0_91] : memref<2x8x32xf32, #tpu.memory_space<vmem>>, vector<2x8x32xf32>
      tpu.vector_store %arg15[%c0_89, %c0_90, %c0_91], %178 {strides = array<i32>} : memref<2x8x32xf32, #tpu.memory_space<vmem>>, vector<2x8x32xf32>,
    } else {
    }
    %c0 = arith.constant 0 : index
    %c0_1 = arith.constant 0 : index
    %c0_2 = arith.constant 0 : index
    %3 = vector.load %arg15[%c0, %c0_1, %c0_2] : memref<2x8x32xf32, #tpu.memory_space<vmem>>, vector<2x8x32xf32>
    %4 = vector.shape_cast %3 : vector<2x8x32xf32> to vector<16x32xf32>
    %c0_3 = arith.constant 0 : index
    %c0_4 = arith.constant 0 : index
    %c0_5 = arith.constant 0 : index
    %5 = vector.load %arg3[%c0_3, %c0_4, %c0_5] : memref<1x1x32xf32, #tpu.memory_space<vmem>>, vector<1x1x32xf32>
    %6 = vector.shape_cast %5 : vector<1x1x32xf32> to vector<1x32xf32>
    %c0_6 = arith.constant 0 : index
    %c0_7 = arith.constant 0 : index
    %c0_8 = arith.constant 0 : index
    %7 = vector.load %arg4[%c0_6, %c0_7, %c0_8] : memref<1x1x32xf32, #tpu.memory_space<vmem>>, vector<1x1x32xf32>
    %8 = vector.shape_cast %7 : vector<1x1x32xf32> to vector<1x32xf32>
    %cst = arith.constant dense<0.000000e+00> : vector<16xf32>
    %9 = vector.multi_reduction <add>, %4, %cst [1] : vector<16x32xf32> to vector<16xf32>
    %10 = vector.shape_cast %9 : vector<16xf32> to vector<16x1xf32>
    %cst_9 = arith.constant 3.200000e+01 : f32
    %11 = vector.broadcast %cst_9 : f32 to vector<16x1xf32>
    %12 = arith.divf %10, %11 : vector<16x1xf32>
    %13 = vector.broadcast %12 : vector<16x1xf32> to vector<16x32xf32>
    %14 = arith.subf %4, %13 : vector<16x32xf32>
    %15 = arith.mulf %14, %14 : vector<16x32xf32>
    %cst_10 = arith.constant dense<0.000000e+00> : vector<16xf32>
    %16 = vector.multi_reduction <add>, %15, %cst_10 [1] : vector<16x32xf32> to vector<16xf32>
    %17 = vector.shape_cast %16 : vector<16xf32> to vector<16x1xf32>
    %cst_11 = arith.constant 3.200000e+01 : f32
    %18 = vector.broadcast %cst_11 : f32 to vector<16x1xf32>
    %19 = arith.divf %17, %18 : vector<16x1xf32>
    %20 = vector.broadcast %12 : vector<16x1xf32> to vector<16x32xf32>
    %21 = arith.subf %4, %20 : vector<16x32xf32>
    %cst_12 = arith.constant 9.99999974E-6 : f32
    %22 = vector.broadcast %cst_12 : f32 to vector<16x1xf32>
    %23 = arith.addf %19, %22 : vector<16x1xf32>
    %24 = math.rsqrt %23 : vector<16x1xf32>
    %25 = vector.broadcast %24 : vector<16x1xf32> to vector<16x32xf32>
    %26 = arith.mulf %21, %25 : vector<16x32xf32>
    %27 = vector.broadcast %6 : vector<1x32xf32> to vector<16x32xf32>
    %28 = arith.mulf %26, %27 : vector<16x32xf32>
    %29 = vector.broadcast %8 : vector<1x32xf32> to vector<16x32xf32>
    %30 = arith.addf %28, %29 : vector<16x32xf32>
    %31 = arith.truncf %30 : vector<16x32xf32> to vector<16x32xbf16>
    %c0_13 = arith.constant 0 : index
    %c0_14 = arith.constant 0 : index
    %c0_15 = arith.constant 0 : index
    %32 = vector.load %arg5[%c0_13, %c0_14, %c0_15] : memref<1x32x96xbf16, #tpu.memory_space<vmem>>, vector<1x32x96xbf16>
    %33 = vector.shape_cast %32 : vector<1x32x96xbf16> to vector<32x96xbf16>
    %cst_16 = arith.constant dense<0.000000e+00> : vector<16x96xf32>
    %34 = tpu.matmul %31, %33, %cst_16 {dimension_numbers = #tpu.dot_dimension_numbers<[1], [0], [0], [1], [0, 0, 1, 1], [], []>} : vector<16x32xbf16>, vector<32x96xbf16>, vector<16x96xf32> -> vector<16x96xf32>
    %c0_17 = arith.constant 0 : index
    %c0_18 = arith.constant 0 : index
    %c0_19 = arith.constant 0 : index
    %35 = vector.load %arg6[%c0_17, %c0_18, %c0_19] : memref<1x1x96xf32, #tpu.memory_space<vmem>>, vector<1x1x96xf32>
    %36 = vector.shape_cast %35 : vector<1x1x96xf32> to vector<1x96xf32>
    %37 = vector.broadcast %36 : vector<1x96xf32> to vector<16x96xf32>
    %38 = arith.addf %34, %37 : vector<16x96xf32>
    %39 = arith.truncf %38 : vector<16x96xf32> to vector<16x96xbf16>
    %40 = vector.shape_cast %39 : vector<16x96xbf16> to vector<2x8x96xbf16>
    %41 = vector.extract_strided_slice %40 {offsets = [0, 0, 0], sizes = [2, 8, 8], strides = [1, 1, 1]} : vector<2x8x96xbf16> to vector<2x8x8xbf16>
    %42 = vector.extract_strided_slice %40 {offsets = [0, 0, 32], sizes = [2, 8, 8], strides = [1, 1, 1]} : vector<2x8x96xbf16> to vector<2x8x8xbf16>
    %43 = vector.extract_strided_slice %40 {offsets = [0, 0, 64], sizes = [2, 8, 8], strides = [1, 1, 1]} : vector<2x8x96xbf16> to vector<2x8x8xbf16>
    "tpu.trace_start"() <{level = 10 : i32, message = "bld,bmd->blm"}> : () -> ()
    %cst_20 = arith.constant dense<0.000000e+00> : vector<2x8x8xf32>
    %44 = tpu.matmul %41, %42, %cst_20 {dimension_numbers = #tpu.dot_dimension_numbers<[2], [2], [1], [1], [0, 0, 0, 1, 1, 1], [0], [0]>} : vector<2x8x8xbf16>, vector<2x8x8xbf16>, vector<2x8x8xf32> -> vector<2x8x8xf32>
    "tpu.trace_stop"() : () -> ()
    %cst_21 = arith.constant dense<0xFF800000> : vector<2x8xf32>
    %45 = vector.multi_reduction <maximumf>, %44, %cst_21 [2] : vector<2x8x8xf32> to vector<2x8xf32>
    %46 = vector.shape_cast %45 : vector<2x8xf32> to vector<2x8x1xf32>
    %47 = vector.broadcast %46 : vector<2x8x1xf32> to vector<2x8x8xf32>
    %48 = arith.subf %44, %47 : vector<2x8x8xf32>
    %49 = math.exp %48 : vector<2x8x8xf32>
    %cst_22 = arith.constant dense<0.000000e+00> : vector<2x8xf32>
    %50 = vector.multi_reduction <add>, %49, %cst_22 [2] : vector<2x8x8xf32> to vector<2x8xf32>
    %51 = vector.shape_cast %50 : vector<2x8xf32> to vector<2x8x1xf32>
    %52 = tpu.reciprocal %51 {approx = true} : vector<2x8x1xf32> -> vector<2x8x1xf32>
    %53 = vector.broadcast %52 : vector<2x8x1xf32> to vector<2x8x8xf32>
    %54 = arith.mulf %49, %53 : vector<2x8x8xf32>
    %55 = arith.truncf %54 : vector<2x8x8xf32> to vector<2x8x8xbf16>
    "tpu.trace_start"() <{level = 10 : i32, message = "blm,bmd->bld"}> : () -> ()
    %cst_23 = arith.constant dense<0.000000e+00> : vector<2x8x8xf32>
    %56 = tpu.matmul %55, %43, %cst_23 {dimension_numbers = #tpu.dot_dimension_numbers<[2], [1], [1], [2], [0, 0, 0, 1, 1, 2], [0], [0]>} : vector<2x8x8xbf16>, vector<2x8x8xbf16>, vector<2x8x8xf32> -> vector<2x8x8xf32>
    "tpu.trace_stop"() : () -> ()
    %57 = arith.truncf %56 : vector<2x8x8xf32> to vector<2x8x8xbf16>
    %c0_24 = arith.constant 0 : index
    %c0_25 = arith.constant 0 : index
    %c0_26 = arith.constant 0 : index
    %58 = vector.load %arg16[%c0_24, %c0_25, %c0_26] : memref<2x8x32xbf16, #tpu.memory_space<vmem>>, vector<2x8x8xbf16>
    tpu.vector_store %arg16[%c0_24, %c0_25, %c0_26], %57 {strides = array<i32>} : memref<2x8x32xbf16, #tpu.memory_space<vmem>>, vector<2x8x8xbf16>,
    %59 = vector.extract_strided_slice %40 {offsets = [0, 0, 8], sizes = [2, 8, 8], strides = [1, 1, 1]} : vector<2x8x96xbf16> to vector<2x8x8xbf16>
    %60 = vector.extract_strided_slice %40 {offsets = [0, 0, 40], sizes = [2, 8, 8], strides = [1, 1, 1]} : vector<2x8x96xbf16> to vector<2x8x8xbf16>
    %61 = vector.extract_strided_slice %40 {offsets = [0, 0, 72], sizes = [2, 8, 8], strides = [1, 1, 1]} : vector<2x8x96xbf16> to vector<2x8x8xbf16>
    "tpu.trace_start"() <{level = 10 : i32, message = "bld,bmd->blm"}> : () -> ()
    %cst_27 = arith.constant dense<0.000000e+00> : vector<2x8x8xf32>
    %62 = tpu.matmul %59, %60, %cst_27 {dimension_numbers = #tpu.dot_dimension_numbers<[2], [2], [1], [1], [0, 0, 0, 1, 1, 1], [0], [0]>} : vector<2x8x8xbf16>, vector<2x8x8xbf16>, vector<2x8x8xf32> -> vector<2x8x8xf32>
    "tpu.trace_stop"() : () -> ()
    %cst_28 = arith.constant dense<0xFF800000> : vector<2x8xf32>
    %63 = vector.multi_reduction <maximumf>, %62, %cst_28 [2] : vector<2x8x8xf32> to vector<2x8xf32>
    %64 = vector.shape_cast %63 : vector<2x8xf32> to vector<2x8x1xf32>
    %65 = vector.broadcast %64 : vector<2x8x1xf32> to vector<2x8x8xf32>
    %66 = arith.subf %62, %65 : vector<2x8x8xf32>
    %67 = math.exp %66 : vector<2x8x8xf32>
    %cst_29 = arith.constant dense<0.000000e+00> : vector<2x8xf32>
    %68 = vector.multi_reduction <add>, %67, %cst_29 [2] : vector<2x8x8xf32> to vector<2x8xf32>
    %69 = vector.shape_cast %68 : vector<2x8xf32> to vector<2x8x1xf32>
    %70 = tpu.reciprocal %69 {approx = true} : vector<2x8x1xf32> -> vector<2x8x1xf32>
    %71 = vector.broadcast %70 : vector<2x8x1xf32> to vector<2x8x8xf32>
    %72 = arith.mulf %67, %71 : vector<2x8x8xf32>
    %73 = arith.truncf %72 : vector<2x8x8xf32> to vector<2x8x8xbf16>
    "tpu.trace_start"() <{level = 10 : i32, message = "blm,bmd->bld"}> : () -> ()
    %cst_30 = arith.constant dense<0.000000e+00> : vector<2x8x8xf32>
    %74 = tpu.matmul %73, %61, %cst_30 {dimension_numbers = #tpu.dot_dimension_numbers<[2], [1], [1], [2], [0, 0, 0, 1, 1, 2], [0], [0]>} : vector<2x8x8xbf16>, vector<2x8x8xbf16>, vector<2x8x8xf32> -> vector<2x8x8xf32>
    "tpu.trace_stop"() : () -> ()
    %75 = arith.truncf %74 : vector<2x8x8xf32> to vector<2x8x8xbf16>
    %c0_31 = arith.constant 0 : index
    %c0_32 = arith.constant 0 : index
    %c8 = arith.constant 8 : index
    %76 = vector.load %arg16[%c0_31, %c0_32, %c8] : memref<2x8x32xbf16, #tpu.memory_space<vmem>>, vector<2x8x8xbf16>
    tpu.vector_store %arg16[%c0_31, %c0_32, %c8], %75 {strides = array<i32>} : memref<2x8x32xbf16, #tpu.memory_space<vmem>>, vector<2x8x8xbf16>,
    %77 = vector.extract_strided_slice %40 {offsets = [0, 0, 16], sizes = [2, 8, 8], strides = [1, 1, 1]} : vector<2x8x96xbf16> to vector<2x8x8xbf16>
    %78 = vector.extract_strided_slice %40 {offsets = [0, 0, 48], sizes = [2, 8, 8], strides = [1, 1, 1]} : vector<2x8x96xbf16> to vector<2x8x8xbf16>
    %79 = vector.extract_strided_slice %40 {offsets = [0, 0, 80], sizes = [2, 8, 8], strides = [1, 1, 1]} : vector<2x8x96xbf16> to vector<2x8x8xbf16>
    "tpu.trace_start"() <{level = 10 : i32, message = "bld,bmd->blm"}> : () -> ()
    %cst_33 = arith.constant dense<0.000000e+00> : vector<2x8x8xf32>
    %80 = tpu.matmul %77, %78, %cst_33 {dimension_numbers = #tpu.dot_dimension_numbers<[2], [2], [1], [1], [0, 0, 0, 1, 1, 1], [0], [0]>} : vector<2x8x8xbf16>, vector<2x8x8xbf16>, vector<2x8x8xf32> -> vector<2x8x8xf32>
    "tpu.trace_stop"() : () -> ()
    %cst_34 = arith.constant dense<0xFF800000> : vector<2x8xf32>
    %81 = vector.multi_reduction <maximumf>, %80, %cst_34 [2] : vector<2x8x8xf32> to vector<2x8xf32>
    %82 = vector.shape_cast %81 : vector<2x8xf32> to vector<2x8x1xf32>
    %83 = vector.broadcast %82 : vector<2x8x1xf32> to vector<2x8x8xf32>
    %84 = arith.subf %80, %83 : vector<2x8x8xf32>
    %85 = math.exp %84 : vector<2x8x8xf32>
    %cst_35 = arith.constant dense<0.000000e+00> : vector<2x8xf32>
    %86 = vector.multi_reduction <add>, %85, %cst_35 [2] : vector<2x8x8xf32> to vector<2x8xf32>
    %87 = vector.shape_cast %86 : vector<2x8xf32> to vector<2x8x1xf32>
    %88 = tpu.reciprocal %87 {approx = true} : vector<2x8x1xf32> -> vector<2x8x1xf32>
    %89 = vector.broadcast %88 : vector<2x8x1xf32> to vector<2x8x8xf32>
    %90 = arith.mulf %85, %89 : vector<2x8x8xf32>
    %91 = arith.truncf %90 : vector<2x8x8xf32> to vector<2x8x8xbf16>
    "tpu.trace_start"() <{level = 10 : i32, message = "blm,bmd->bld"}> : () -> ()
    %cst_36 = arith.constant dense<0.000000e+00> : vector<2x8x8xf32>
    %92 = tpu.matmul %91, %79, %cst_36 {dimension_numbers = #tpu.dot_dimension_numbers<[2], [1], [1], [2], [0, 0, 0, 1, 1, 2], [0], [0]>} : vector<2x8x8xbf16>, vector<2x8x8xbf16>, vector<2x8x8xf32> -> vector<2x8x8xf32>
    "tpu.trace_stop"() : () -> ()
    %93 = arith.truncf %92 : vector<2x8x8xf32> to vector<2x8x8xbf16>
    %c0_37 = arith.constant 0 : index
    %c0_38 = arith.constant 0 : index
    %c16 = arith.constant 16 : index
    %94 = vector.load %arg16[%c0_37, %c0_38, %c16] : memref<2x8x32xbf16, #tpu.memory_space<vmem>>, vector<2x8x8xbf16>
    tpu.vector_store %arg16[%c0_37, %c0_38, %c16], %93 {strides = array<i32>} : memref<2x8x32xbf16, #tpu.memory_space<vmem>>, vector<2x8x8xbf16>,
    %95 = vector.extract_strided_slice %40 {offsets = [0, 0, 24], sizes = [2, 8, 8], strides = [1, 1, 1]} : vector<2x8x96xbf16> to vector<2x8x8xbf16>
    %96 = vector.extract_strided_slice %40 {offsets = [0, 0, 56], sizes = [2, 8, 8], strides = [1, 1, 1]} : vector<2x8x96xbf16> to vector<2x8x8xbf16>
    %97 = vector.extract_strided_slice %40 {offsets = [0, 0, 88], sizes = [2, 8, 8], strides = [1, 1, 1]} : vector<2x8x96xbf16> to vector<2x8x8xbf16>
    "tpu.trace_start"() <{level = 10 : i32, message = "bld,bmd->blm"}> : () -> ()
    %cst_39 = arith.constant dense<0.000000e+00> : vector<2x8x8xf32>
    %98 = tpu.matmul %95, %96, %cst_39 {dimension_numbers = #tpu.dot_dimension_numbers<[2], [2], [1], [1], [0, 0, 0, 1, 1, 1], [0], [0]>} : vector<2x8x8xbf16>, vector<2x8x8xbf16>, vector<2x8x8xf32> -> vector<2x8x8xf32>
    "tpu.trace_stop"() : () -> ()
    %cst_40 = arith.constant dense<0xFF800000> : vector<2x8xf32>
    %99 = vector.multi_reduction <maximumf>, %98, %cst_40 [2] : vector<2x8x8xf32> to vector<2x8xf32>
    %100 = vector.shape_cast %99 : vector<2x8xf32> to vector<2x8x1xf32>
    %101 = vector.broadcast %100 : vector<2x8x1xf32> to vector<2x8x8xf32>
    %102 = arith.subf %98, %101 : vector<2x8x8xf32>
    %103 = math.exp %102 : vector<2x8x8xf32>
    %cst_41 = arith.constant dense<0.000000e+00> : vector<2x8xf32>
    %104 = vector.multi_reduction <add>, %103, %cst_41 [2] : vector<2x8x8xf32> to vector<2x8xf32>
    %105 = vector.shape_cast %104 : vector<2x8xf32> to vector<2x8x1xf32>
    %106 = tpu.reciprocal %105 {approx = true} : vector<2x8x1xf32> -> vector<2x8x1xf32>
    %107 = vector.broadcast %106 : vector<2x8x1xf32> to vector<2x8x8xf32>
    %108 = arith.mulf %103, %107 : vector<2x8x8xf32>
    %109 = arith.truncf %108 : vector<2x8x8xf32> to vector<2x8x8xbf16>
    "tpu.trace_start"() <{level = 10 : i32, message = "blm,bmd->bld"}> : () -> ()
    %cst_42 = arith.constant dense<0.000000e+00> : vector<2x8x8xf32>
    %110 = tpu.matmul %109, %97, %cst_42 {dimension_numbers = #tpu.dot_dimension_numbers<[2], [1], [1], [2], [0, 0, 0, 1, 1, 2], [0], [0]>} : vector<2x8x8xbf16>, vector<2x8x8xbf16>, vector<2x8x8xf32> -> vector<2x8x8xf32>
    "tpu.trace_stop"() : () -> ()
    %111 = arith.truncf %110 : vector<2x8x8xf32> to vector<2x8x8xbf16>
    %c0_43 = arith.constant 0 : index
    %c0_44 = arith.constant 0 : index
    %c24 = arith.constant 24 : index
    %112 = vector.load %arg16[%c0_43, %c0_44, %c24] : memref<2x8x32xbf16, #tpu.memory_space<vmem>>, vector<2x8x8xbf16>
    tpu.vector_store %arg16[%c0_43, %c0_44, %c24], %111 {strides = array<i32>} : memref<2x8x32xbf16, #tpu.memory_space<vmem>>, vector<2x8x8xbf16>,
    %c0_45 = arith.constant 0 : index
    %c0_46 = arith.constant 0 : index
    %c0_47 = arith.constant 0 : index
    %113 = vector.load %arg16[%c0_45, %c0_46, %c0_47] : memref<2x8x32xbf16, #tpu.memory_space<vmem>>, vector<2x8x32xbf16>
    %114 = vector.shape_cast %113 : vector<2x8x32xbf16> to vector<16x32xbf16>
    %c0_48 = arith.constant 0 : index
    %c0_49 = arith.constant 0 : index
    %c0_50 = arith.constant 0 : index
    %115 = vector.load %arg7[%c0_48, %c0_49, %c0_50] : memref<1x32x32xbf16, #tpu.memory_space<vmem>>, vector<1x32x32xbf16>
    %116 = vector.shape_cast %115 : vector<1x32x32xbf16> to vector<32x32xbf16>
    %cst_51 = arith.constant dense<0.000000e+00> : vector<16x32xf32>
    %117 = tpu.matmul %114, %116, %cst_51 {dimension_numbers = #tpu.dot_dimension_numbers<[1], [0], [0], [1], [0, 0, 1, 1], [], []>} : vector<16x32xbf16>, vector<32x32xbf16>, vector<16x32xf32> -> vector<16x32xf32>
    %c0_52 = arith.constant 0 : index
    %c0_53 = arith.constant 0 : index
    %c0_54 = arith.constant 0 : index
    %118 = vector.load %arg8[%c0_52, %c0_53, %c0_54] : memref<1x1x32xf32, #tpu.memory_space<vmem>>, vector<1x1x32xf32>
    %119 = vector.shape_cast %118 : vector<1x1x32xf32> to vector<1x32xf32>
    %120 = vector.broadcast %119 : vector<1x32xf32> to vector<16x32xf32>
    %121 = arith.addf %117, %120 : vector<16x32xf32>
    %122 = arith.addf %4, %121 : vector<16x32xf32>
    %c0_55 = arith.constant 0 : index
    %c0_56 = arith.constant 0 : index
    %c0_57 = arith.constant 0 : index
    %123 = vector.load %arg9[%c0_55, %c0_56, %c0_57] : memref<1x1x32xf32, #tpu.memory_space<vmem>>, vector<1x1x32xf32>
    %124 = vector.shape_cast %123 : vector<1x1x32xf32> to vector<1x32xf32>
    %c0_58 = arith.constant 0 : index
    %c0_59 = arith.constant 0 : index
    %c0_60 = arith.constant 0 : index
    %125 = vector.load %arg10[%c0_58, %c0_59, %c0_60] : memref<1x1x32xf32, #tpu.memory_space<vmem>>, vector<1x1x32xf32>
    %126 = vector.shape_cast %125 : vector<1x1x32xf32> to vector<1x32xf32>
    %cst_61 = arith.constant dense<0.000000e+00> : vector<16xf32>
    %127 = vector.multi_reduction <add>, %122, %cst_61 [1] : vector<16x32xf32> to vector<16xf32>
    %128 = vector.shape_cast %127 : vector<16xf32> to vector<16x1xf32>
    %cst_62 = arith.constant 3.200000e+01 : f32
    %129 = vector.broadcast %cst_62 : f32 to vector<16x1xf32>
    %130 = arith.divf %128, %129 : vector<16x1xf32>
    %131 = vector.broadcast %130 : vector<16x1xf32> to vector<16x32xf32>
    %132 = arith.subf %122, %131 : vector<16x32xf32>
    %133 = arith.mulf %132, %132 : vector<16x32xf32>
    %cst_63 = arith.constant dense<0.000000e+00> : vector<16xf32>
    %134 = vector.multi_reduction <add>, %133, %cst_63 [1] : vector<16x32xf32> to vector<16xf32>
    %135 = vector.shape_cast %134 : vector<16xf32> to vector<16x1xf32>
    %cst_64 = arith.constant 3.200000e+01 : f32
    %136 = vector.broadcast %cst_64 : f32 to vector<16x1xf32>
    %137 = arith.divf %135, %136 : vector<16x1xf32>
    %138 = vector.broadcast %130 : vector<16x1xf32> to vector<16x32xf32>
    %139 = arith.subf %122, %138 : vector<16x32xf32>
    %cst_65 = arith.constant 9.99999974E-6 : f32
    %140 = vector.broadcast %cst_65 : f32 to vector<16x1xf32>
    %141 = arith.addf %137, %140 : vector<16x1xf32>
    %142 = math.rsqrt %141 : vector<16x1xf32>
    %143 = vector.broadcast %142 : vector<16x1xf32> to vector<16x32xf32>
    %144 = arith.mulf %139, %143 : vector<16x32xf32>
    %145 = vector.broadcast %124 : vector<1x32xf32> to vector<16x32xf32>
    %146 = arith.mulf %144, %145 : vector<16x32xf32>
    %147 = vector.broadcast %126 : vector<1x32xf32> to vector<16x32xf32>
    %148 = arith.addf %146, %147 : vector<16x32xf32>
    %149 = arith.truncf %148 : vector<16x32xf32> to vector<16x32xbf16>
    %cst_66 = arith.constant 0.000000e+00 : f32
    %150 = vector.broadcast %cst_66 : f32 to vector<16x32xf32>
    %c0_67 = arith.constant 0 : index
    %c0_68 = arith.constant 0 : index
    %c0_69 = arith.constant 0 : index
    %151 = vector.load %arg14[%c0_67, %c0_68, %c0_69] : memref<1x1x32xf32, #tpu.memory_space<vmem>>, vector<1x1x32xf32>
    %152 = vector.shape_cast %151 : vector<1x1x32xf32> to vector<1x32xf32>
    %153 = vector.broadcast %152 : vector<1x32xf32> to vector<16x32xf32>
    %154 = arith.addf %150, %153 : vector<16x32xf32>
    %c0_70 = arith.constant 0 : index
    %c0_71 = arith.constant 0 : index
    %c0_72 = arith.constant 0 : index
    %155 = vector.load %arg11[%c0_70, %c0_71, %c0_72] : memref<1x32x128xbf16, #tpu.memory_space<vmem>>, vector<1x32x128xbf16>
    %156 = vector.shape_cast %155 : vector<1x32x128xbf16> to vector<32x128xbf16>
    %cst_73 = arith.constant dense<0.000000e+00> : vector<16x128xf32>
    %157 = tpu.matmul %149, %156, %cst_73 {dimension_numbers = #tpu.dot_dimension_numbers<[1], [0], [0], [1], [0, 0, 1, 1], [], []>} : vector<16x32xbf16>, vector<32x128xbf16>, vector<16x128xf32> -> vector<16x128xf32>
    %c0_74 = arith.constant 0 : index
    %c0_75 = arith.constant 0 : index
    %c0_76 = arith.constant 0 : index
    %158 = vector.load %arg12[%c0_74, %c0_75, %c0_76] : memref<1x1x128xf32, #tpu.memory_space<vmem>>, vector<1x1x128xf32>
    %159 = vector.shape_cast %158 : vector<1x1x128xf32> to vector<1x128xf32>
    %160 = vector.broadcast %159 : vector<1x128xf32> to vector<16x128xf32>
    %161 = arith.addf %157, %160 : vector<16x128xf32>
    %cst_77 = arith.constant 1.702000e+00 : f32
    %162 = vector.broadcast %cst_77 : f32 to vector<16x128xf32>
    %163 = arith.mulf %162, %161 : vector<16x128xf32>
    %164 = arith.negf %163 : vector<16x128xf32>
    %165 = math.exp %164 : vector<16x128xf32>
    %cst_78 = arith.constant 1.000000e+00 : f32
    %166 = vector.broadcast %cst_78 : f32 to vector<16x128xf32>
    %167 = arith.addf %166, %165 : vector<16x128xf32>
    %168 = arith.divf %166, %167 : vector<16x128xf32>
    %169 = arith.mulf %161, %168 : vector<16x128xf32>
    %170 = arith.truncf %169 : vector<16x128xf32> to vector<16x128xbf16>
    %c0_79 = arith.constant 0 : index
    %c0_80 = arith.constant 0 : index
    %c0_81 = arith.constant 0 : index
    %171 = vector.load %arg13[%c0_79, %c0_80, %c0_81] : memref<1x128x32xbf16, #tpu.memory_space<vmem>>, vector<1x128x32xbf16>
    %172 = vector.shape_cast %171 : vector<1x128x32xbf16> to vector<128x32xbf16>
    %cst_82 = arith.constant dense<0.000000e+00> : vector<16x32xf32>
    %173 = tpu.matmul %170, %172, %cst_82 {dimension_numbers = #tpu.dot_dimension_numbers<[1], [0], [0], [1], [0, 0, 1, 1], [], []>} : vector<16x128xbf16>, vector<128x32xbf16>, vector<16x32xf32> -> vector<16x32xf32>
    %174 = arith.addf %154, %173 : vector<16x32xf32>
    %175 = arith.addf %122, %174 : vector<16x32xf32>
    %176 = vector.shape_cast %175 : vector<16x32xf32> to vector<2x8x32xf32>
    %c0_83 = arith.constant 0 : index
    %c0_84 = arith.constant 0 : index
    %c0_85 = arith.constant 0 : index
    %177 = vector.load %arg15[%c0_83, %c0_84, %c0_85] : memref<2x8x32xf32, #tpu.memory_space<vmem>>, vector<2x8x32xf32>
    tpu.vector_store %arg15[%c0_83, %c0_84, %c0_85], %176 {strides = array<i32>} : memref<2x8x32xf32, #tpu.memory_space<vmem>>, vector<2x8x32xf32>,
    return
  }
  func.func @transform_0(%arg0: i32, %arg1: i32) -> (i32, i32, i32) {
    %c0_i32 = arith.constant 0 : i32
    %c0_i32_0 = arith.constant 0 : i32
    %c0_i32_1 = arith.constant 0 : i32
    return %arg0, %c0_i32, %c0_i32_0 : i32, i32, i32
  }
  func.func @transform_1(%arg0: i32, %arg1: i32) -> (i32, i32, i32) {
    %c0_i32 = arith.constant 0 : i32
    %c0_i32_0 = arith.constant 0 : i32
    %c0_i32_1 = arith.constant 0 : i32
    return %arg1, %c0_i32, %c0_i32_0 : i32, i32, i32
  }
  func.func @transform_2(%arg0: i32, %arg1: i32) -> (i32, i32, i32) {
    %c0_i32 = arith.constant 0 : i32
    %c0_i32_0 = arith.constant 0 : i32
    %c0_i32_1 = arith.constant 0 : i32
    return %arg1, %c0_i32, %c0_i32_0 : i32, i32, i32
  }
  func.func @transform_3(%arg0: i32, %arg1: i32) -> (i32, i32, i32) {
    %c0_i32 = arith.constant 0 : i32
    %c0_i32_0 = arith.constant 0 : i32
    %c0_i32_1 = arith.constant 0 : i32
    return %arg1, %c0_i32, %c0_i32_0 : i32, i32, i32
  }
  func.func @transform_4(%arg0: i32, %arg1: i32) -> (i32, i32, i32) {
    %c0_i32 = arith.constant 0 : i32
    %c0_i32_0 = arith.constant 0 : i32
    %c0_i32_1 = arith.constant 0 : i32
    return %arg1, %c0_i32, %c0_i32_0 : i32, i32, i32
  }
  func.func @transform_5(%arg0: i32, %arg1: i32) -> (i32, i32, i32) {
    %c0_i32 = arith.constant 0 : i32
    %c0_i32_0 = arith.constant 0 : i32
    %c0_i32_1 = arith.constant 0 : i32
    return %arg1, %c0_i32, %c0_i32_0 : i32, i32, i32
  }
  func.func @transform_6(%arg0: i32, %arg1: i32) -> (i32, i32, i32) {
    %c0_i32 = arith.constant 0 : i32
    %c0_i32_0 = arith.constant 0 : i32
    %c0_i32_1 = arith.constant 0 : i32
    return %arg1, %c0_i32, %c0_i32_0 : i32, i32, i32
  }
  func.func @transform_7(%arg0: i32, %arg1: i32) -> (i32, i32, i32) {
    %c0_i32 = arith.constant 0 : i32
    %c0_i32_0 = arith.constant 0 : i32
    %c0_i32_1 = arith.constant 0 : i32
    return %arg1, %c0_i32, %c0_i32_0 : i32, i32, i32
  }
  func.func @transform_8(%arg0: i32, %arg1: i32) -> (i32, i32, i32) {
    %c0_i32 = arith.constant 0 : i32
    %c0_i32_0 = arith.constant 0 : i32
    %c0_i32_1 = arith.constant 0 : i32
    return %arg1, %c0_i32, %c0_i32_0 : i32, i32, i32
  }
  func.func @transform_9(%arg0: i32, %arg1: i32) -> (i32, i32, i32) {
    %c0_i32 = arith.constant 0 : i32
    %c0_i32_0 = arith.constant 0 : i32
    %c0_i32_1 = arith.constant 0 : i32
    return %arg1, %c0_i32, %c0_i32_0 : i32, i32, i32
  }
  func.func @transform_10(%arg0: i32, %arg1: i32) -> (i32, i32, i32) {
    %c0_i32 = arith.constant 0 : i32
    %c0_i32_0 = arith.constant 0 : i32
    %c0_i32_1 = arith.constant 0 : i32
    return %arg1, %c0_i32, %c0_i32_0 : i32, i32, i32
  }
  func.func @transform_11(%arg0: i32, %arg1: i32) -> (i32, i32, i32) {
    %c0_i32 = arith.constant 0 : i32
    %c0_i32_0 = arith.constant 0 : i32
    %c0_i32_1 = arith.constant 0 : i32
    return %arg1, %c0_i32, %c0_i32_0 : i32, i32, i32
  }
  func.func @transform_12(%arg0: i32, %arg1: i32) -> (i32, i32, i32) {
    %c0_i32 = arith.constant 0 : i32
    %c0_i32_0 = arith.constant 0 : i32
    %c0_i32_1 = arith.constant 0 : i32
    return %arg1, %c0_i32, %c0_i32_0 : i32, i32, i32
  }
  func.func @transform_13(%arg0: i32, %arg1: i32) -> (i32, i32, i32) {
    %c0_i32 = arith.constant 0 : i32
    %c0_i32_0 = arith.constant 0 : i32
    %c0_i32_1 = arith.constant 0 : i32
    return %arg0, %c0_i32, %c0_i32_0 : i32, i32, i32
  }
}

</mosaic_0001>

<llo_original>
// kernel: tpu_custom_call.1
$region0: #{tpu_custom_call.1}
  #allocation0 [shape = 'u32[]', space=smem, size = 0x4, offset = 0x4, fixed_abs, tag = 'smem constant byte address 0x4 - core index']
  #allocation1 [shape = 'u32[144,128]{1,0:T(1,128)}', space=vmem, size = 0x12000, scoped, tag = 'internal scratch']
  #allocation2 [shape = 'bf16[2,8,32]{2,1,0:T(8,128)(2,1)}', space=vmem, size = 0x1000, scoped, tag = 'scratch operand']
  %s0 = inlined_call_operand.vmem [shape: f32[4,8,32], index: 0, kind: input, shape index: {}]
  %s1 = inlined_call_operand.vmem [shape: f32[2,1,32], index: 1, kind: input, shape index: {}]
  %s2 = inlined_call_operand.vmem [shape: f32[2,1,32], index: 2, kind: input, shape index: {}]
  %s3 = inlined_call_operand.vmem [shape: bf16[2,32,96], index: 3, kind: input, shape index: {}]
  %s4 = inlined_call_operand.vmem [shape: f32[2,1,96], index: 4, kind: input, shape index: {}]
  %s5 = inlined_call_operand.vmem [shape: bf16[2,32,32], index: 5, kind: input, shape index: {}]
  %s6 = inlined_call_operand.vmem [shape: f32[2,1,32], index: 6, kind: input, shape index: {}]
  %s7 = inlined_call_operand.vmem [shape: f32[2,1,32], index: 7, kind: input, shape index: {}]
  %s8 = inlined_call_operand.vmem [shape: f32[2,1,32], index: 8, kind: input, shape index: {}]
  %s9 = inlined_call_operand.vmem [shape: bf16[2,32,128], index: 9, kind: input, shape index: {}]
  %s10 = inlined_call_operand.vmem [shape: f32[2,1,128], index: 10, kind: input, shape index: {}]
  %s11 = inlined_call_operand.vmem [shape: bf16[2,128,32], index: 11, kind: input, shape index: {}]
  %s12 = inlined_call_operand.vmem [shape: f32[2,1,32], index: 12, kind: input, shape index: {}]
  %s13 = inlined_call_operand.hbm [shape: f32[4,8,32], index: 13, kind: output, shape index: {}]
  %s14 = sld [smem:[#allocation0]]
  $region89: #{tpu_custom_call.1} parent=0
    _
  %s16 = ssub.s32 1, %s14
  %s17 = scalar_select 0, %s16, %s14
  $region1: #{tpu_custom_call.1} parent=0
    #allocation3 [shape = 'u8[16384]{0}', space=vmem, size = 0x4000, scoped, tag = 'output window, operand 0']
    #allocation4 [shape = 's32[2]{0}', space=sflag, size = 0x8, scoped, tag = 'scoped memory for tpu_custom_call.1']
    %18 = vsyncpa [#allocation4], 0
    %s19 = scalar_lea.sflag [#allocation4], 1
    %20 = vsyncpa %s19, 0
    loop: start=0, step=1, limit=6
    $region2: #{tpu_custom_call.1} parent=1 // loop_pre_header
      _
    $region3: #{tpu_custom_call.1} parent=1 // loop_header
      %s22 = sphi 0, %s26
      %p23 = scmp.ge.s32.totalorder %s22, 6
      %s29 = sphi 0, %s41
      %s30 = sphi 0, %s37
      %s31 = sphi 0, %s29
      %s32 = sphi 0, %s30
      %s33 = sphi 0, %s31
      %s34 = sphi 0, %s32
      %s44 = sphi 0, %s46
      %s47 = sphi 0, %s44
      %s48 = sphi 0, %s47
      %s64 = sphi 0, %s48
      %s70 = sphi 0, %s72
      %s73 = sphi 0, %s70
      %s74 = sphi 0, %s73
      %s90 = sphi 0, %s74
      %s96 = sphi 0, %s98
      %s99 = sphi 0, %s96
      %s100 = sphi 0, %s99
      %s116 = sphi 0, %s100
      %s122 = sphi 0, %s124
      %s125 = sphi 0, %s122
      %s126 = sphi 0, %s125
      %s142 = sphi 0, %s126
      %s148 = sphi 0, %s150
      %s151 = sphi 0, %s148
      %s152 = sphi 0, %s151
      %s168 = sphi 0, %s152
      %s174 = sphi 0, %s176
      %s177 = sphi 0, %s174
      %s178 = sphi 0, %s177
      %s194 = sphi 0, %s178
      %s200 = sphi 0, %s202
      %s203 = sphi 0, %s200
      %s204 = sphi 0, %s203
      %s220 = sphi 0, %s204
      %s226 = sphi 0, %s228
      %s229 = sphi 0, %s226
      %s230 = sphi 0, %s229
      %s246 = sphi 0, %s230
      %s252 = sphi 0, %s254
      %s255 = sphi 0, %s252
      %s256 = sphi 0, %s255
      %s272 = sphi 0, %s256
      %s278 = sphi 0, %s280
      %s281 = sphi 0, %s278
      %s282 = sphi 0, %s281
      %s298 = sphi 0, %s282
      %s304 = sphi 0, %s306
      %s307 = sphi 0, %s304
      %s308 = sphi 0, %s307
      %s324 = sphi 0, %s308
      %s330 = sphi 0, %s332
      %s333 = sphi 0, %s330
      %s334 = sphi 0, %s333
      %s350 = sphi 0, %s334
      %s356 = sphi 0, %s358
      %s359 = sphi 0, %s356
      %s360 = sphi 0, %s359
      %s376 = sphi 0, %s360
      %s382 = sphi 0, %s384
      %s385 = sphi 0, %s382
      %s386 = sphi 0, %s385
      %s402 = sphi 0, %s386
    $region4: #{tpu_custom_call.1} parent=1 // loop_header_branch
      %25 = sbr.rel (%p23) target = $region8
    $region5: #{tpu_custom_call.1} parent=1 // loop_body
      %s27 = ssub.s32 %s22, 1
      %s28 = ssub.s32 %s22, 2
      %s35 = sadd.s32 1, %s30
      %p36 = scmp.ge.s32.totalorder %s35, 2
      %s37 = scalar_select %p36, 0, %s35
      %s38 = sadd.s32 1, %s29
      %s39 = scalar_select %p36, %s38, %s29
      %p40 = scmp.ge.s32.totalorder %s39, 2
      %s41 = scalar_select %p40, 0, %s39
      %s42 = ssub.s32 %s29, %s41
      %p43 = scmp.eq.s32.totalorder %s42, 0
      %s45 = sadd.s32 %s44, 1
      %s46 = scalar_select %p43, %s44, %s45
      %p49 = pneg %p43
      %p50 = scmp.eq.s32.totalorder %s22, 3
      %p51 = por %p49, %p50
      %p52 = scmp.ne.s32.totalorder %s44, %s47
      %p53 = scmp.eq.s32.totalorder %s22, 0
      %p54 = por %p52, %p53
      %p55 = scmp.ne.s32.totalorder %s44, %s47
      %p56 = scmp.eq.s32.totalorder %s27, 3
      %p57 = por %p55, %p56
      %p58 = scmp.ne.s32.totalorder %s47, %s48
      %p59 = scmp.eq.s32.totalorder %s27, 0
      %p60 = por %p58, %p59
      %p61 = scmp.ne.s32.totalorder %s47, %s48
      %p62 = scmp.eq.s32.totalorder %s28, 3
      %p63 = por %p61, %p62
      %p65 = scmp.ne.s32.totalorder %s48, %s64
      %p66 = scmp.eq.s32.totalorder %s28, 0
      %p67 = por %p65, %p66
      %s68 = ssub.s32 %s30, %s37
      %p69 = scmp.eq.s32.totalorder %s68, 0
      %s71 = sadd.s32 %s70, 1
      %s72 = scalar_select %p69, %s70, %s71
      %p75 = pneg %p69
      %p76 = scmp.eq.s32.totalorder %s22, 3
      %p77 = por %p75, %p76
      %p78 = scmp.ne.s32.totalorder %s70, %s73
      %p79 = scmp.eq.s32.totalorder %s22, 0
      %p80 = por %p78, %p79
      %p81 = scmp.ne.s32.totalorder %s70, %s73
      %p82 = scmp.eq.s32.totalorder %s27, 3
      %p83 = por %p81, %p82
      %p84 = scmp.ne.s32.totalorder %s73, %s74
      %p85 = scmp.eq.s32.totalorder %s27, 0
      %p86 = por %p84, %p85
      %p87 = scmp.ne.s32.totalorder %s73, %s74
      %p88 = scmp.eq.s32.totalorder %s28, 3
      %p89 = por %p87, %p88
      %p91 = scmp.ne.s32.totalorder %s74, %s90
      %p92 = scmp.eq.s32.totalorder %s28, 0
      %p93 = por %p91, %p92
      %s94 = ssub.s32 %s30, %s37
      %p95 = scmp.eq.s32.totalorder %s94, 0
      %s97 = sadd.s32 %s96, 1
      %s98 = scalar_select %p95, %s96, %s97
      %p101 = pneg %p95
      %p102 = scmp.eq.s32.totalorder %s22, 3
      %p103 = por %p101, %p102
      %p104 = scmp.ne.s32.totalorder %s96, %s99
      %p105 = scmp.eq.s32.totalorder %s22, 0
      %p106 = por %p104, %p105
      %p107 = scmp.ne.s32.totalorder %s96, %s99
      %p108 = scmp.eq.s32.totalorder %s27, 3
      %p109 = por %p107, %p108
      %p110 = scmp.ne.s32.totalorder %s99, %s100
      %p111 = scmp.eq.s32.totalorder %s27, 0
      %p112 = por %p110, %p111
      %p113 = scmp.ne.s32.totalorder %s99, %s100
      %p114 = scmp.eq.s32.totalorder %s28, 3
      %p115 = por %p113, %p114
      %p117 = scmp.ne.s32.totalorder %s100, %s116
      %p118 = scmp.eq.s32.totalorder %s28, 0
      %p119 = por %p117, %p118
      %s120 = ssub.s32 %s30, %s37
      %p121 = scmp.eq.s32.totalorder %s120, 0
      %s123 = sadd.s32 %s122, 1
      %s124 = scalar_select %p121, %s122, %s123
      %p127 = pneg %p121
      %p128 = scmp.eq.s32.totalorder %s22, 3
      %p129 = por %p127, %p128
      %p130 = scmp.ne.s32.totalorder %s122, %s125
      %p131 = scmp.eq.s32.totalorder %s22, 0
      %p132 = por %p130, %p131
      %p133 = scmp.ne.s32.totalorder %s122, %s125
      %p134 = scmp.eq.s32.totalorder %s27, 3
      %p135 = por %p133, %p134
      %p136 = scmp.ne.s32.totalorder %s125, %s126
      %p137 = scmp.eq.s32.totalorder %s27, 0
      %p138 = por %p136, %p137
      %p139 = scmp.ne.s32.totalorder %s125, %s126
      %p140 = scmp.eq.s32.totalorder %s28, 3
      %p141 = por %p139, %p140
      %p143 = scmp.ne.s32.totalorder %s126, %s142
      %p144 = scmp.eq.s32.totalorder %s28, 0
      %p145 = por %p143, %p144
      %s146 = ssub.s32 %s30, %s37
      %p147 = scmp.eq.s32.totalorder %s146, 0
      %s149 = sadd.s32 %s148, 1
      %s150 = scalar_select %p147, %s148, %s149
      %p153 = pneg %p147
      %p154 = scmp.eq.s32.totalorder %s22, 3
      %p155 = por %p153, %p154
      %p156 = scmp.ne.s32.totalorder %s148, %s151
      %p157 = scmp.eq.s32.totalorder %s22, 0
      %p158 = por %p156, %p157
      %p159 = scmp.ne.s32.totalorder %s148, %s151
      %p160 = scmp.eq.s32.totalorder %s27, 3
      %p161 = por %p159, %p160
      %p162 = scmp.ne.s32.totalorder %s151, %s152
      %p163 = scmp.eq.s32.totalorder %s27, 0
      %p164 = por %p162, %p163
      %p165 = scmp.ne.s32.totalorder %s151, %s152
      %p166 = scmp.eq.s32.totalorder %s28, 3
      %p167 = por %p165, %p166
      %p169 = scmp.ne.s32.totalorder %s152, %s168
      %p170 = scmp.eq.s32.totalorder %s28, 0
      %p171 = por %p169, %p170
      %s172 = ssub.s32 %s30, %s37
      %p173 = scmp.eq.s32.totalorder %s172, 0
      %s175 = sadd.s32 %s174, 1
      %s176 = scalar_select %p173, %s174, %s175
      %p179 = pneg %p173
      %p180 = scmp.eq.s32.totalorder %s22, 3
      %p181 = por %p179, %p180
      %p182 = scmp.ne.s32.totalorder %s174, %s177
      %p183 = scmp.eq.s32.totalorder %s22, 0
      %p184 = por %p182, %p183
      %p185 = scmp.ne.s32.totalorder %s174, %s177
      %p186 = scmp.eq.s32.totalorder %s27, 3
      %p187 = por %p185, %p186
      %p188 = scmp.ne.s32.totalorder %s177, %s178
      %p189 = scmp.eq.s32.totalorder %s27, 0
      %p190 = por %p188, %p189
      %p191 = scmp.ne.s32.totalorder %s177, %s178
      %p192 = scmp.eq.s32.totalorder %s28, 3
      %p193 = por %p191, %p192
      %p195 = scmp.ne.s32.totalorder %s178, %s194
      %p196 = scmp.eq.s32.totalorder %s28, 0
      %p197 = por %p195, %p196
      %s198 = ssub.s32 %s30, %s37
      %p199 = scmp.eq.s32.totalorder %s198, 0
      %s201 = sadd.s32 %s200, 1
      %s202 = scalar_select %p199, %s200, %s201
      %p205 = pneg %p199
      %p206 = scmp.eq.s32.totalorder %s22, 3
      %p207 = por %p205, %p206
      %p208 = scmp.ne.s32.totalorder %s200, %s203
      %p209 = scmp.eq.s32.totalorder %s22, 0
      %p210 = por %p208, %p209
      %p211 = scmp.ne.s32.totalorder %s200, %s203
      %p212 = scmp.eq.s32.totalorder %s27, 3
      %p213 = por %p211, %p212
      %p214 = scmp.ne.s32.totalorder %s203, %s204
      %p215 = scmp.eq.s32.totalorder %s27, 0
      %p216 = por %p214, %p215
      %p217 = scmp.ne.s32.totalorder %s203, %s204
      %p218 = scmp.eq.s32.totalorder %s28, 3
      %p219 = por %p217, %p218
      %p221 = scmp.ne.s32.totalorder %s204, %s220
      %p222 = scmp.eq.s32.totalorder %s28, 0
      %p223 = por %p221, %p222
      %s224 = ssub.s32 %s30, %s37
      %p225 = scmp.eq.s32.totalorder %s224, 0
      %s227 = sadd.s32 %s226, 1
      %s228 = scalar_select %p225, %s226, %s227
      %p231 = pneg %p225
      %p232 = scmp.eq.s32.totalorder %s22, 3
      %p233 = por %p231, %p232
      %p234 = scmp.ne.s32.totalorder %s226, %s229
      %p235 = scmp.eq.s32.totalorder %s22, 0
      %p236 = por %p234, %p235
      %p237 = scmp.ne.s32.totalorder %s226, %s229
      %p238 = scmp.eq.s32.totalorder %s27, 3
      %p239 = por %p237, %p238
      %p240 = scmp.ne.s32.totalorder %s229, %s230
      %p241 = scmp.eq.s32.totalorder %s27, 0
      %p242 = por %p240, %p241
      %p243 = scmp.ne.s32.totalorder %s229, %s230
      %p244 = scmp.eq.s32.totalorder %s28, 3
      %p245 = por %p243, %p244
      %p247 = scmp.ne.s32.totalorder %s230, %s246
      %p248 = scmp.eq.s32.totalorder %s28, 0
      %p249 = por %p247, %p248
      %s250 = ssub.s32 %s30, %s37
      %p251 = scmp.eq.s32.totalorder %s250, 0
      %s253 = sadd.s32 %s252, 1
      %s254 = scalar_select %p251, %s252, %s253
      %p257 = pneg %p251
      %p258 = scmp.eq.s32.totalorder %s22, 3
      %p259 = por %p257, %p258
      %p260 = scmp.ne.s32.totalorder %s252, %s255
      %p261 = scmp.eq.s32.totalorder %s22, 0
      %p262 = por %p260, %p261
      %p263 = scmp.ne.s32.totalorder %s252, %s255
      %p264 = scmp.eq.s32.totalorder %s27, 3
      %p265 = por %p263, %p264
      %p266 = scmp.ne.s32.totalorder %s255, %s256
      %p267 = scmp.eq.s32.totalorder %s27, 0
      %p268 = por %p266, %p267
      %p269 = scmp.ne.s32.totalorder %s255, %s256
      %p270 = scmp.eq.s32.totalorder %s28, 3
      %p271 = por %p269, %p270
      %p273 = scmp.ne.s32.totalorder %s256, %s272
      %p274 = scmp.eq.s32.totalorder %s28, 0
      %p275 = por %p273, %p274
      %s276 = ssub.s32 %s30, %s37
      %p277 = scmp.eq.s32.totalorder %s276, 0
      %s279 = sadd.s32 %s278, 1
      %s280 = scalar_select %p277, %s278, %s279
      %p283 = pneg %p277
      %p284 = scmp.eq.s32.totalorder %s22, 3
      %p285 = por %p283, %p284
      %p286 = scmp.ne.s32.totalorder %s278, %s281
      %p287 = scmp.eq.s32.totalorder %s22, 0
      %p288 = por %p286, %p287
      %p289 = scmp.ne.s32.totalorder %s278, %s281
      %p290 = scmp.eq.s32.totalorder %s27, 3
      %p291 = por %p289, %p290
      %p292 = scmp.ne.s32.totalorder %s281, %s282
      %p293 = scmp.eq.s32.totalorder %s27, 0
      %p294 = por %p292, %p293
      %p295 = scmp.ne.s32.totalorder %s281, %s282
      %p296 = scmp.eq.s32.totalorder %s28, 3
      %p297 = por %p295, %p296
      %p299 = scmp.ne.s32.totalorder %s282, %s298
      %p300 = scmp.eq.s32.totalorder %s28, 0
      %p301 = por %p299, %p300
      %s302 = ssub.s32 %s30, %s37
      %p303 = scmp.eq.s32.totalorder %s302, 0
      %s305 = sadd.s32 %s304, 1
      %s306 = scalar_select %p303, %s304, %s305
      %p309 = pneg %p303
      %p310 = scmp.eq.s32.totalorder %s22, 3
      %p311 = por %p309, %p310
      %p312 = scmp.ne.s32.totalorder %s304, %s307
      %p313 = scmp.eq.s32.totalorder %s22, 0
      %p314 = por %p312, %p313
      %p315 = scmp.ne.s32.totalorder %s304, %s307
      %p316 = scmp.eq.s32.totalorder %s27, 3
      %p317 = por %p315, %p316
      %p318 = scmp.ne.s32.totalorder %s307, %s308
      %p319 = scmp.eq.s32.totalorder %s27, 0
      %p320 = por %p318, %p319
      %p321 = scmp.ne.s32.totalorder %s307, %s308
      %p322 = scmp.eq.s32.totalorder %s28, 3
      %p323 = por %p321, %p322
      %p325 = scmp.ne.s32.totalorder %s308, %s324
      %p326 = scmp.eq.s32.totalorder %s28, 0
      %p327 = por %p325, %p326
      %s328 = ssub.s32 %s30, %s37
      %p329 = scmp.eq.s32.totalorder %s328, 0
      %s331 = sadd.s32 %s330, 1
      %s332 = scalar_select %p329, %s330, %s331
      %p335 = pneg %p329
      %p336 = scmp.eq.s32.totalorder %s22, 3
      %p337 = por %p335, %p336
      %p338 = scmp.ne.s32.totalorder %s330, %s333
      %p339 = scmp.eq.s32.totalorder %s22, 0
      %p340 = por %p338, %p339
      %p341 = scmp.ne.s32.totalorder %s330, %s333
      %p342 = scmp.eq.s32.totalorder %s27, 3
      %p343 = por %p341, %p342
      %p344 = scmp.ne.s32.totalorder %s333, %s334
      %p345 = scmp.eq.s32.totalorder %s27, 0
      %p346 = por %p344, %p345
      %p347 = scmp.ne.s32.totalorder %s333, %s334
      %p348 = scmp.eq.s32.totalorder %s28, 3
      %p349 = por %p347, %p348
      %p351 = scmp.ne.s32.totalorder %s334, %s350
      %p352 = scmp.eq.s32.totalorder %s28, 0
      %p353 = por %p351, %p352
      %s354 = ssub.s32 %s30, %s37
      %p355 = scmp.eq.s32.totalorder %s354, 0
      %s357 = sadd.s32 %s356, 1
      %s358 = scalar_select %p355, %s356, %s357
      %p361 = pneg %p355
      %p362 = scmp.eq.s32.totalorder %s22, 3
      %p363 = por %p361, %p362
      %p364 = scmp.ne.s32.totalorder %s356, %s359
      %p365 = scmp.eq.s32.totalorder %s22, 0
      %p366 = por %p364, %p365
      %p367 = scmp.ne.s32.totalorder %s356, %s359
      %p368 = scmp.eq.s32.totalorder %s27, 3
      %p369 = por %p367, %p368
      %p370 = scmp.ne.s32.totalorder %s359, %s360
      %p371 = scmp.eq.s32.totalorder %s27, 0
      %p372 = por %p370, %p371
      %p373 = scmp.ne.s32.totalorder %s359, %s360
      %p374 = scmp.eq.s32.totalorder %s28, 3
      %p375 = por %p373, %p374
      %p377 = scmp.ne.s32.totalorder %s360, %s376
      %p378 = scmp.eq.s32.totalorder %s28, 0
      %p379 = por %p377, %p378
      %s380 = ssub.s32 %s29, %s41
      %p381 = scmp.eq.s32.totalorder %s380, 0
      %s383 = sadd.s32 %s382, 1
      %s384 = scalar_select %p381, %s382, %s383
      %p387 = pneg %p381
      %p388 = scmp.eq.s32.totalorder %s22, 3
      %p389 = por %p387, %p388
      %p390 = scmp.ne.s32.totalorder %s382, %s385
      %p391 = scmp.eq.s32.totalorder %s22, 0
      %p392 = por %p390, %p391
      %p393 = scmp.ne.s32.totalorder %s382, %s385
      %p394 = scmp.eq.s32.totalorder %s27, 3
      %p395 = por %p393, %p394
      %p396 = scmp.ne.s32.totalorder %s385, %s386
      %p397 = scmp.eq.s32.totalorder %s27, 0
      %p398 = por %p396, %p397
      %p399 = scmp.ne.s32.totalorder %s385, %s386
      %p400 = scmp.eq.s32.totalorder %s28, 3
      %p401 = por %p399, %p400
      %p403 = scmp.ne.s32.totalorder %s386, %s402
      %p404 = scmp.eq.s32.totalorder %s28, 0
      %p405 = por %p403, %p404
      %p406 = scmp.le.s32.totalorder 1, %s22
      %p407 = scmp.lt.s32.totalorder %s22, 5
      %p408 = pnand %p406, %p407
      %p409 = pneg %p408
      // Predicated region
      $region9: #{tpu_custom_call.1} parent=5 // pred_check
        _
      $region10: #{tpu_custom_call.1} parent=5 // pred_check_branch
        %411 = sbr.rel (%p408) target = $region12
      $region11: #{tpu_custom_call.1} parent=5 // pred_region
        %s412 = ssub.s32 %s22, 1
      $region12: #{tpu_custom_call.1} parent=5 // pred_fallthru
        _
      %p413 = scmp.lt.s32.totalorder %s22, 4
      // Predicated region
      $region13: #{tpu_custom_call.1} parent=5 // pred_check
        %p414 = pneg %p413
      $region14: #{tpu_custom_call.1} parent=5 // pred_check_branch
        %416 = sbr.rel (%p414) target = $region16
      $region15: #{tpu_custom_call.1} parent=5 // pred_region
        // Predicated region
        $region17: #{tpu_custom_call.1} parent=15 // pred_check
          %p417 = pneg %p54
        $region18: #{tpu_custom_call.1} parent=15 // pred_check_branch
          %419 = sbr.rel (%p417) target = $region20
        $region19: #{tpu_custom_call.1} parent=15 // pred_region
          %s420 = smul.u32 2, %s29
          %p421 = scmp.lt.s32.totalorder %s420, 3
          %s422 = scalar_select %p421, %s420, 3
          %s423 = smul.addr %s422, 8
          %s424 = scalar_lea.vmem %s0, %s423
          %s425 = smul.u32 2, %s29
        $region20: #{tpu_custom_call.1} parent=15 // pred_fallthru
          _
        // Predicated region
        $region21: #{tpu_custom_call.1} parent=15 // pred_check
          %p426 = pneg %p80
        $region22: #{tpu_custom_call.1} parent=15 // pred_check_branch
          %428 = sbr.rel (%p426) target = $region24
        $region23: #{tpu_custom_call.1} parent=15 // pred_region
          %p429 = scmp.lt.s32.totalorder %s30, 1
          %s430 = scalar_select %p429, %s30, 1
          %s431 = scalar_lea.vmem %s1, %s430
        $region24: #{tpu_custom_call.1} parent=15 // pred_fallthru
          _
        // Predicated region
        $region25: #{tpu_custom_call.1} parent=15 // pred_check
          %p432 = pneg %p106
        $region26: #{tpu_custom_call.1} parent=15 // pred_check_branch
          %434 = sbr.rel (%p432) target = $region28
        $region27: #{tpu_custom_call.1} parent=15 // pred_region
          %p435 = scmp.lt.s32.totalorder %s30, 1
          %s436 = scalar_select %p435, %s30, 1
          %s437 = scalar_lea.vmem %s2, %s436
        $region28: #{tpu_custom_call.1} parent=15 // pred_fallthru
          _
        // Predicated region
        $region29: #{tpu_custom_call.1} parent=15 // pred_check
          %p438 = pneg %p132
        $region30: #{tpu_custom_call.1} parent=15 // pred_check_branch
          %440 = sbr.rel (%p438) target = $region32
        $region31: #{tpu_custom_call.1} parent=15 // pred_region
          %p441 = scmp.lt.s32.totalorder %s30, 1
          %s442 = scalar_select %p441, %s30, 1
          %s443 = smul.addr %s442, 4
          %s444 = smul.addr %s443, 4
          %s445 = scalar_lea.vmem %s3, %s444
        $region32: #{tpu_custom_call.1} parent=15 // pred_fallthru
          _
        // Predicated region
        $region33: #{tpu_custom_call.1} parent=15 // pred_check
          %p446 = pneg %p158
        $region34: #{tpu_custom_call.1} parent=15 // pred_check_branch
          %448 = sbr.rel (%p446) target = $region36
        $region35: #{tpu_custom_call.1} parent=15 // pred_region
          %p449 = scmp.lt.s32.totalorder %s30, 1
          %s450 = scalar_select %p449, %s30, 1
          %s451 = scalar_lea.vmem %s4, %s450
        $region36: #{tpu_custom_call.1} parent=15 // pred_fallthru
          _
        // Predicated region
        $region37: #{tpu_custom_call.1} parent=15 // pred_check
          %p452 = pneg %p184
        $region38: #{tpu_custom_call.1} parent=15 // pred_check_branch
          %454 = sbr.rel (%p452) target = $region40
        $region39: #{tpu_custom_call.1} parent=15 // pred_region
          %p455 = scmp.lt.s32.totalorder %s30, 1
          %s456 = scalar_select %p455, %s30, 1
          %s457 = smul.addr %s456, 4
          %s458 = smul.addr %s457, 4
          %s459 = scalar_lea.vmem %s5, %s458
        $region40: #{tpu_custom_call.1} parent=15 // pred_fallthru
          _
        // Predicated region
        $region41: #{tpu_custom_call.1} parent=15 // pred_check
          %p460 = pneg %p210
        $region42: #{tpu_custom_call.1} parent=15 // pred_check_branch
          %462 = sbr.rel (%p460) target = $region44
        $region43: #{tpu_custom_call.1} parent=15 // pred_region
          %p463 = scmp.lt.s32.totalorder %s30, 1
          %s464 = scalar_select %p463, %s30, 1
          %s465 = scalar_lea.vmem %s6, %s464
        $region44: #{tpu_custom_call.1} parent=15 // pred_fallthru
          _
        // Predicated region
        $region45: #{tpu_custom_call.1} parent=15 // pred_check
          %p466 = pneg %p236
        $region46: #{tpu_custom_call.1} parent=15 // pred_check_branch
          %468 = sbr.rel (%p466) target = $region48
        $region47: #{tpu_custom_call.1} parent=15 // pred_region
          %p469 = scmp.lt.s32.totalorder %s30, 1
          %s470 = scalar_select %p469, %s30, 1
          %s471 = scalar_lea.vmem %s7, %s470
        $region48: #{tpu_custom_call.1} parent=15 // pred_fallthru
          _
        // Predicated region
        $region49: #{tpu_custom_call.1} parent=15 // pred_check
          %p472 = pneg %p262
        $region50: #{tpu_custom_call.1} parent=15 // pred_check_branch
          %474 = sbr.rel (%p472) target = $region52
        $region51: #{tpu_custom_call.1} parent=15 // pred_region
          %p475 = scmp.lt.s32.totalorder %s30, 1
          %s476 = scalar_select %p475, %s30, 1
          %s477 = scalar_lea.vmem %s8, %s476
        $region52: #{tpu_custom_call.1} parent=15 // pred_fallthru
          _
        // Predicated region
        $region53: #{tpu_custom_call.1} parent=15 // pred_check
          %p478 = pneg %p288
        $region54: #{tpu_custom_call.1} parent=15 // pred_check_branch
          %480 = sbr.rel (%p478) target = $region56
        $region55: #{tpu_custom_call.1} parent=15 // pred_region
          %p481 = scmp.lt.s32.totalorder %s30, 1
          %s482 = scalar_select %p481, %s30, 1
          %s483 = smul.addr %s482, 4
          %s484 = smul.addr %s483, 4
          %s485 = scalar_lea.vmem %s9, %s484
        $region56: #{tpu_custom_call.1} parent=15 // pred_fallthru
          _
        // Predicated region
        $region57: #{tpu_custom_call.1} parent=15 // pred_check
          %p486 = pneg %p314
        $region58: #{tpu_custom_call.1} parent=15 // pred_check_branch
          %488 = sbr.rel (%p486) target = $region60
        $region59: #{tpu_custom_call.1} parent=15 // pred_region
          %p489 = scmp.lt.s32.totalorder %s30, 1
          %s490 = scalar_select %p489, %s30, 1
          %s491 = scalar_lea.vmem %s10, %s490
        $region60: #{tpu_custom_call.1} parent=15 // pred_fallthru
          _
        // Predicated region
        $region61: #{tpu_custom_call.1} parent=15 // pred_check
          %p492 = pneg %p340
        $region62: #{tpu_custom_call.1} parent=15 // pred_check_branch
          %494 = sbr.rel (%p492) target = $region64
        $region63: #{tpu_custom_call.1} parent=15 // pred_region
          %p495 = scmp.lt.s32.totalorder %s30, 1
          %s496 = scalar_select %p495, %s30, 1
          %s497 = smul.addr %s496, 16
          %s498 = smul.addr %s497, 4
          %s499 = scalar_lea.vmem %s11, %s498
        $region64: #{tpu_custom_call.1} parent=15 // pred_fallthru
          _
        // Predicated region
        $region65: #{tpu_custom_call.1} parent=15 // pred_check
          %p500 = pneg %p366
        $region66: #{tpu_custom_call.1} parent=15 // pred_check_branch
          %502 = sbr.rel (%p500) target = $region68
        $region67: #{tpu_custom_call.1} parent=15 // pred_region
          %p503 = scmp.lt.s32.totalorder %s30, 1
          %s504 = scalar_select %p503, %s30, 1
          %s505 = scalar_lea.vmem %s12, %s504
        $region68: #{tpu_custom_call.1} parent=15 // pred_fallthru
          _
      $region16: #{tpu_custom_call.1} parent=5 // pred_fallthru
        _
      %p506 = scmp.le.s32.totalorder 1, %s22
      %p507 = scmp.lt.s32.totalorder %s22, 5
      %p508 = pnand %p506, %p507
      %p509 = pneg %p508
      // Predicated region
      $region69: #{tpu_custom_call.1} parent=5 // pred_check
        _
      $region70: #{tpu_custom_call.1} parent=5 // pred_check_branch
        %511 = sbr.rel (%p508) target = $region72
      $region71: #{tpu_custom_call.1} parent=5 // pred_region
        %s512 = ssub.s32 %s22, 1
        %s513 = smul.u32 2, %s31
        %p514 = scmp.lt.s32.totalorder %s513, 3
        %s515 = scalar_select %p514, %s513, 3
        %s516 = smul.addr %s515, 8
        %s517 = scalar_lea.vmem %s0, %s516
        %p518 = pneg %p60
        %p519 = pneg %p57
        %p520 = scmp.lt.s32.totalorder %s32, 1
        %s521 = scalar_select %p520, %s32, 1
        %s522 = scalar_lea.vmem %s1, %s521
        %p523 = pneg %p86
        %p524 = pneg %p83
        %p525 = scmp.lt.s32.totalorder %s32, 1
        %s526 = scalar_select %p525, %s32, 1
        %s527 = scalar_lea.vmem %s2, %s526
        %p528 = pneg %p112
        %p529 = pneg %p109
        %p530 = scmp.lt.s32.totalorder %s32, 1
        %s531 = scalar_select %p530, %s32, 1
        %s532 = smul.addr %s531, 4
        %s533 = smul.addr %s532, 4
        %s534 = scalar_lea.vmem %s3, %s533
        %p535 = pneg %p138
        %p536 = pneg %p135
        %p537 = scmp.lt.s32.totalorder %s32, 1
        %s538 = scalar_select %p537, %s32, 1
        %s539 = scalar_lea.vmem %s4, %s538
        %p540 = pneg %p164
        %p541 = pneg %p161
        %p542 = scmp.lt.s32.totalorder %s32, 1
        %s543 = scalar_select %p542, %s32, 1
        %s544 = smul.addr %s543, 4
        %s545 = smul.addr %s544, 4
        %s546 = scalar_lea.vmem %s5, %s545
        %p547 = pneg %p190
        %p548 = pneg %p187
        %p549 = scmp.lt.s32.totalorder %s32, 1
        %s550 = scalar_select %p549, %s32, 1
        %s551 = scalar_lea.vmem %s6, %s550
        %p552 = pneg %p216
        %p553 = pneg %p213
        %p554 = scmp.lt.s32.totalorder %s32, 1
        %s555 = scalar_select %p554, %s32, 1
        %s556 = scalar_lea.vmem %s7, %s555
        %p557 = pneg %p242
        %p558 = pneg %p239
        %p559 = scmp.lt.s32.totalorder %s32, 1
        %s560 = scalar_select %p559, %s32, 1
        %s561 = scalar_lea.vmem %s8, %s560
        %p562 = pneg %p268
        %p563 = pneg %p265
        %p564 = scmp.lt.s32.totalorder %s32, 1
        %s565 = scalar_select %p564, %s32, 1
        %s566 = smul.addr %s565, 4
        %s567 = smul.addr %s566, 4
        %s568 = scalar_lea.vmem %s9, %s567
        %p569 = pneg %p294
        %p570 = pneg %p291
        %p571 = scmp.lt.s32.totalorder %s32, 1
        %s572 = scalar_select %p571, %s32, 1
        %s573 = scalar_lea.vmem %s10, %s572
        %p574 = pneg %p320
        %p575 = pneg %p317
        %p576 = scmp.lt.s32.totalorder %s32, 1
        %s577 = scalar_select %p576, %s32, 1
        %s578 = smul.addr %s577, 16
        %s579 = smul.addr %s578, 4
        %s580 = scalar_lea.vmem %s11, %s579
        %p581 = pneg %p346
        %p582 = pneg %p343
        %p583 = scmp.lt.s32.totalorder %s32, 1
        %s584 = scalar_select %p583, %s32, 1
        %s585 = scalar_lea.vmem %s12, %s584
        %p586 = pneg %p372
        %p587 = pneg %p369
        %p588 = pneg %p398
        %p589 = pneg %p395
        %s590 = sand.u32 %s385, 1
        %s591 = scalar_lea.sflag [#allocation4], %s590
        %s592 = sand.u32 %s385, 1
        %s593 = smul.addr %s592, 16
        %s594 = scalar_lea.vmem [#allocation3], %s593
        %s595 = smul.u32 2, %s31
        %p596 = scmp.lt.s32.totalorder %s595, 3
        %s597 = scalar_select %p596, %s595, 3
        %s598 = smul.addr %s597, 8
        %s599 = scalar_lea.vmem %s0, %s598
        %s600 = smul.u32 2, %s31
        %p601 = scmp.lt.s32.totalorder %s32, 1
        %s602 = scalar_select %p601, %s32, 1
        %s603 = scalar_lea.vmem %s1, %s602
        %p604 = scmp.lt.s32.totalorder %s32, 1
        %s605 = scalar_select %p604, %s32, 1
        %s606 = scalar_lea.vmem %s2, %s605
        %p607 = scmp.lt.s32.totalorder %s32, 1
        %s608 = scalar_select %p607, %s32, 1
        %s609 = smul.addr %s608, 4
        %s610 = smul.addr %s609, 4
        %s611 = scalar_lea.vmem %s3, %s610
        %p612 = scmp.lt.s32.totalorder %s32, 1
        %s613 = scalar_select %p612, %s32, 1
        %s614 = scalar_lea.vmem %s4, %s613
        %p615 = scmp.lt.s32.totalorder %s32, 1
        %s616 = scalar_select %p615, %s32, 1
        %s617 = smul.addr %s616, 4
        %s618 = smul.addr %s617, 4
        %s619 = scalar_lea.vmem %s5, %s618
        %p620 = scmp.lt.s32.totalorder %s32, 1
        %s621 = scalar_select %p620, %s32, 1
        %s622 = scalar_lea.vmem %s6, %s621
        %p623 = scmp.lt.s32.totalorder %s32, 1
        %s624 = scalar_select %p623, %s32, 1
        %s625 = scalar_lea.vmem %s7, %s624
        %p626 = scmp.lt.s32.totalorder %s32, 1
        %s627 = scalar_select %p626, %s32, 1
        %s628 = scalar_lea.vmem %s8, %s627
        %p629 = scmp.lt.s32.totalorder %s32, 1
        %s630 = scalar_select %p629, %s32, 1
        %s631 = smul.addr %s630, 4
        %s632 = smul.addr %s631, 4
        %s633 = scalar_lea.vmem %s9, %s632
        %p634 = scmp.lt.s32.totalorder %s32, 1
        %s635 = scalar_select %p634, %s32, 1
        %s636 = scalar_lea.vmem %s10, %s635
        %p637 = scmp.lt.s32.totalorder %s32, 1
        %s638 = scalar_select %p637, %s32, 1
        %s639 = smul.addr %s638, 16
        %s640 = smul.addr %s639, 4
        %s641 = scalar_lea.vmem %s11, %s640
        %p642 = scmp.lt.s32.totalorder %s32, 1
        %s643 = scalar_select %p642, %s32, 1
        %s644 = scalar_lea.vmem %s12, %s643
        %s645 = smul.u32 2, %s31
        %p647 = scmp.eq.s32.totalorder %s32, 0
        // Predicated region
        $region73: #{tpu_custom_call.1} parent=71 // pred_check
          %p648 = pneg %p647
        $region74: #{tpu_custom_call.1} parent=71 // pred_check_branch
          %650 = sbr.rel (%p648) target = $region76
        $region75: #{tpu_custom_call.1} parent=71 // pred_region
          %v651 = vld [vmem:[%s599] sm:$0xff]
          %v652 = vld [vmem:[%s599 + $0x8] sm:$0xff]
          %vm653 = vcmask 261120
          %654 = vst.msk [vmem:[%s594] sm:$0xff] %vm653, %v651
          %655 = vst.msk [vmem:[%s594 + $0x8] sm:$0xff] %vm653, %v652
        $region76: #{tpu_custom_call.1} parent=71 // pred_fallthru
          _
        %v656 = vld [vmem:[%s594] sm:$0xff]
        %v657 = vld [vmem:[%s594 + $0x8] sm:$0xff]
        %v658 = vld [vmem:[%s603] sm:$0x1]
        %v659 = vld [vmem:[%s606] sm:$0x1]
        %vm660 = vcmask 261120
        %v661 = vsel %vm660, %v656, 0.0
        %662 = vadd.xlane.f32.xlu0 %v661
        %v663 = vpop.xlane.xlu0 %662
        %v664 = vsel %vm660, %v657, 0.0
        %665 = vadd.xlane.f32.xlu0 %v664
        %v666 = vpop.xlane.xlu0 %665
        %v667 = vrcp.pop 32.0
        %v668 = vmul.f32 %v663, %v667
        %v669 = vmul.f32 %v666, %v667
        %v670 = vsub.f32 %v656, %v668
        %v671 = vsub.f32 %v657, %v669
        %v672 = vmul.f32 %v670, %v670
        %v673 = vmul.f32 %v671, %v671
        %v674 = vsel %vm660, %v672, 0.0
        %675 = vadd.xlane.f32.xlu0 %v674
        %v676 = vpop.xlane.xlu0 %675
        %v677 = vsel %vm660, %v673, 0.0
        %678 = vadd.xlane.f32.xlu0 %v677
        %v679 = vpop.xlane.xlu0 %678
        %v680 = vmul.f32 %v676, %v667
        %v681 = vmul.f32 %v679, %v667
        %v682 = vadd.f32 %v680, 1e-05
        %v683 = vadd.f32 %v681, 1e-05
        %v684 = vrsqrt.pop %v682
        %v685 = vrsqrt.pop %v683
        %v686 = vmul.f32 %v670, %v684
        %v687 = vmul.f32 %v671, %v685
        %v689 = vlaneseq
        %v690 = vshrl.u32 %v689, 7
        %v691 = vsub.s32 0, %v690
        %v692 = vrot.slane %v658, %v691
        %v694 = vmul.f32 %v686, %v692
        %v695 = vmul.f32 %v687, %v692
        %v697 = vlaneseq
        %v698 = vshrl.u32 %v697, 7
        %v699 = vsub.s32 0, %v698
        %v700 = vrot.slane %v659, %v699
        %v702 = vadd.f32 %v694, %v700
        %v703 = vadd.f32 %v695, %v700
        %v704 = vpack.c.bf16 %v703, %v702
        %v705 = vld [vmem:[%s611] sm:$0xf]
        %v706 = vld [vmem:[%s611 + $0x4] sm:$0xf]
        %v707 = vld [vmem:[%s611 + $0x8] sm:$0xf]
        %v708 = vld [vmem:[%s611 + $0xc] sm:$0xf]
        %v709 = vld [vmem:[%s614] sm:$0x1]
        %v711 = vlaneseq
        %v712 = vshrl.u32 %v711, 7
        %v713 = vsub.s32 0, %v712
        %v714 = vrot.slane %v709, %v713
        %v720 = vunpack.c.l.b16 %v705
        %v721 = vunpack.c.l.b16 %v706
        %v722 = vunpack.c.l.b16 %v707
        %v723 = vunpack.c.l.b16 %v708
        %v724 = vpack.c.b16 %v721, %v720
        %v725 = vpack.c.b16 %v723, %v722
        %v729 = vsel %vm660, %v704, 0
        %731 = vmatprep.subr.bf16.mxu0 0
        %732 = vmatpush1.bf16.msra.mxu0 %v724
        %733 = vmatprep.subr.bf16.mxu0 0
        %734 = vmatpush1.bf16.msra.mxu0 %v725
        %735 = vmatprep.subr.bf16.mxu0 0
        %736 = vmatpush1.bf16.msra.mxu0 0
        %737 = vmatprep.subr.bf16.mxu0 0
        %738 = vmatpush1.bf16.msra.mxu0 0
        %739 = vmatprep.subr.bf16.mxu0 0
        %740 = vmatpush1.bf16.msra.mxu0 0
        %741 = vmatprep.subr.bf16.mxu0 0
        %742 = vmatpush1.bf16.msra.mxu0 0
        %743 = vmatprep.subr.bf16.mxu0 0
        %744 = vmatpush1.bf16.msra.mxu0 0
        %745 = vmatprep.subr.bf16.mxu0 0
        %746 = vmatpush1.bf16.msra.mxu0 0
        %747 = vmatprep.subr.bf16.mxu0 0
        %748 = vmatpush1.bf16.msra.mxu0 0
        %749 = vmatprep.subr.bf16.mxu0 0
        %750 = vmatpush1.bf16.msra.mxu0 0
        %751 = vmatprep.subr.bf16.mxu0 0
        %752 = vmatpush1.bf16.msra.mxu0 0
        %753 = vmatprep.subr.bf16.mxu0 0
        %754 = vmatpush1.bf16.msra.mxu0 0
        %755 = vmatprep.subr.bf16.mxu0 0
        %756 = vmatpush1.bf16.msra.mxu0 0
        %757 = vmatprep.subr.bf16.mxu0 0
        %758 = vmatpush1.bf16.msra.mxu0 0
        %759 = vmatprep.subr.bf16.mxu0 0
        %760 = vmatpush1.bf16.msra.mxu0 0
        %761 = vmatprep.subr.bf16.mxu0 0
        %762 = vmatpush1.bf16.msra.mxu0 0
        %763 = vmatprep.mubr.bf16.mxu0 0
        %764 = vmatmul.mubr.bf16.gmra.mrb[0].mxu0 %v729
        %v765 = vpop.f32.mrb[0].mxu0
        %v766 = vadd.f32 %v714, %v765
        %v767 = vpop.f32.mrb[0].mxu0
        %v768 = vpop.f32.mrb[0].mxu0
        %v769 = vadd.f32 %v714, %v768
        %v770 = vpop.f32.mrb[0].mxu0
        %771 = vdwg.mxu0
        %v772 = vpack.c.bf16 %v769, %v766
        %v774 = vunpack.c.l.b16 %v772
        %v775 = vunpack.c.h.b16 %v772
        %v776 = vpack.c.b16 %v774, %v774
        %v777 = vpack.c.b16 %v775, %v775
        %778 = vrot.lane.b32.xlu0 %v776, 96
        %v779 = vpop.permute.xlu0 %778
        %vm780 = vcmask 64512
        %v782 = vsel %vm780, %v776, 0
        %v785 = vsel %vm780, %v779, 0
        %787 = vmatprep.subr.bf16.mxu0 0
        %788 = vmatpush1.bf16.xpose.msra.mxu0 %v785
        %789 = vmatprep.subr.bf16.mxu0 0
        %790 = vmatpush1.bf16.xpose.msra.mxu0 0
        %791 = vmatprep.subr.bf16.mxu0 0
        %792 = vmatpush1.bf16.xpose.msra.mxu0 0
        %793 = vmatprep.subr.bf16.mxu0 0
        %794 = vmatpush1.bf16.xpose.msra.mxu0 0
        %795 = vmatprep.subr.bf16.mxu0 0
        %796 = vmatpush1.bf16.xpose.msra.mxu0 0
        %797 = vmatprep.subr.bf16.mxu0 0
        %798 = vmatpush1.bf16.xpose.msra.mxu0 0
        %799 = vmatprep.subr.bf16.mxu0 0
        %800 = vmatpush1.bf16.xpose.msra.mxu0 0
        %801 = vmatprep.subr.bf16.mxu0 0
        %802 = vmatpush1.bf16.xpose.msra.mxu0 0
        %803 = vmatprep.subr.bf16.mxu0 0
        %804 = vmatpush1.bf16.xpose.msra.mxu0 0
        %805 = vmatprep.subr.bf16.mxu0 0
        %806 = vmatpush1.bf16.xpose.msra.mxu0 0
        %807 = vmatprep.subr.bf16.mxu0 0
        %808 = vmatpush1.bf16.xpose.msra.mxu0 0
        %809 = vmatprep.subr.bf16.mxu0 0
        %810 = vmatpush1.bf16.xpose.msra.mxu0 0
        %811 = vmatprep.subr.bf16.mxu0 0
        %812 = vmatpush1.bf16.xpose.msra.mxu0 0
        %813 = vmatprep.subr.bf16.mxu0 0
        %814 = vmatpush1.bf16.xpose.msra.mxu0 0
        %815 = vmatprep.subr.bf16.mxu0 0
        %816 = vmatpush1.bf16.xpose.msra.mxu0 0
        %817 = vmatprep.subr.bf16.mxu0 0
        %818 = vmatpush1.bf16.xpose.msra.mxu0 0
        %819 = vmatprep.mubr.bf16.mxu0 0
        %820 = vmatmul.mubr.bf16.gmra.mrb[0].mxu0 %v782
        %v821 = vpop.f32.mrb[0].mxu0
        %v822 = vadd.f32 0.0, %v821
        %v823 = vpop.f32.mrb[0].mxu0
        %v824 = vpop.f32.mrb[0].mxu0
        %v825 = vpop.f32.mrb[0].mxu0
        %826 = vdwg.mxu0
        %827 = vrot.lane.b32.xlu0 %v777, 96
        %v828 = vpop.permute.xlu0 %827
        %v830 = vsel %vm780, %v777, 0
        %v833 = vsel %vm780, %v828, 0
        %835 = vmatprep.subr.bf16.mxu0 0
        %836 = vmatpush1.bf16.xpose.msra.mxu0 %v833
        %837 = vmatprep.subr.bf16.mxu0 0
        %838 = vmatpush1.bf16.xpose.msra.mxu0 0
        %839 = vmatprep.subr.bf16.mxu0 0
        %840 = vmatpush1.bf16.xpose.msra.mxu0 0
        %841 = vmatprep.subr.bf16.mxu0 0
        %842 = vmatpush1.bf16.xpose.msra.mxu0 0
        %843 = vmatprep.subr.bf16.mxu0 0
        %844 = vmatpush1.bf16.xpose.msra.mxu0 0
        %845 = vmatprep.subr.bf16.mxu0 0
        %846 = vmatpush1.bf16.xpose.msra.mxu0 0
        %847 = vmatprep.subr.bf16.mxu0 0
        %848 = vmatpush1.bf16.xpose.msra.mxu0 0
        %849 = vmatprep.subr.bf16.mxu0 0
        %850 = vmatpush1.bf16.xpose.msra.mxu0 0
        %851 = vmatprep.subr.bf16.mxu0 0
        %852 = vmatpush1.bf16.xpose.msra.mxu0 0
        %853 = vmatprep.subr.bf16.mxu0 0
        %854 = vmatpush1.bf16.xpose.msra.mxu0 0
        %855 = vmatprep.subr.bf16.mxu0 0
        %856 = vmatpush1.bf16.xpose.msra.mxu0 0
        %857 = vmatprep.subr.bf16.mxu0 0
        %858 = vmatpush1.bf16.xpose.msra.mxu0 0
        %859 = vmatprep.subr.bf16.mxu0 0
        %860 = vmatpush1.bf16.xpose.msra.mxu0 0
        %861 = vmatprep.subr.bf16.mxu0 0
        %862 = vmatpush1.bf16.xpose.msra.mxu0 0
        %863 = vmatprep.subr.bf16.mxu0 0
        %864 = vmatpush1.bf16.xpose.msra.mxu0 0
        %865 = vmatprep.subr.bf16.mxu0 0
        %866 = vmatpush1.bf16.xpose.msra.mxu0 0
        %867 = vmatprep.mubr.bf16.mxu0 0
        %868 = vmatmul.mubr.bf16.gmra.mrb[0].mxu0 %v830
        %v869 = vpop.f32.mrb[0].mxu0
        %v870 = vadd.f32 0.0, %v869
        %v871 = vpop.f32.mrb[0].mxu0
        %v872 = vpop.f32.mrb[0].mxu0
        %v873 = vpop.f32.mrb[0].mxu0
        %874 = vdwg.mxu0
        %v875 = vsel %vm780, %v822, -inf
        %876 = vmax.xlane.f32.xlu0 %v875
        %v877 = vpop.xlane.xlu0 %876
        %v878 = vsel %vm780, %v870, -inf
        %879 = vmax.xlane.f32.xlu0 %v878
        %v880 = vpop.xlane.xlu0 %879
        %v881 = vsub.f32 %v822, %v877
        %v882 = vsub.f32 %v870, %v880
        %v883 = vmul.f32 %v881, 1.442695
        %v884 = vpow.pop %v883
        %v885 = vmul.f32 %v882, 1.442695
        %v886 = vpow.pop %v885
        %v887 = vsel %vm780, %v884, 0.0
        %888 = vadd.xlane.f32.xlu0 %v887
        %v889 = vpop.xlane.xlu0 %888
        %v890 = vsel %vm780, %v886, 0.0
        %891 = vadd.xlane.f32.xlu0 %v890
        %v892 = vpop.xlane.xlu0 %891
        %v893 = vrcp.pop %v889
        %v894 = vrcp.pop %v892
        %v895 = vmul.f32 %v884, %v893
        %v896 = vmul.f32 %v886, %v894
        %v897 = vpack.c.bf16 %v895, %v895
        %v898 = vpack.c.bf16 %v896, %v896
        %899 = vrot.lane.b32.xlu0 %v776, 64
        %v900 = vpop.permute.xlu0 %899
        %v902 = vsel %vm780, %v897, 0
        %vm904 = vcmask 1043456
        %v906 = vsel %vm904, %v900, 0
        %908 = vmatprep.subr.bf16.mxu0 0
        %909 = vmatpush1.bf16.msra.mxu0 %v906
        %910 = vmatprep.subr.bf16.mxu0 0
        %911 = vmatpush1.bf16.msra.mxu0 0
        %912 = vmatprep.subr.bf16.mxu0 0
        %913 = vmatpush1.bf16.msra.mxu0 0
        %914 = vmatprep.subr.bf16.mxu0 0
        %915 = vmatpush1.bf16.msra.mxu0 0
        %916 = vmatprep.subr.bf16.mxu0 0
        %917 = vmatpush1.bf16.msra.mxu0 0
        %918 = vmatprep.subr.bf16.mxu0 0
        %919 = vmatpush1.bf16.msra.mxu0 0
        %920 = vmatprep.subr.bf16.mxu0 0
        %921 = vmatpush1.bf16.msra.mxu0 0
        %922 = vmatprep.subr.bf16.mxu0 0
        %923 = vmatpush1.bf16.msra.mxu0 0
        %924 = vmatprep.subr.bf16.mxu0 0
        %925 = vmatpush1.bf16.msra.mxu0 0
        %926 = vmatprep.subr.bf16.mxu0 0
        %927 = vmatpush1.bf16.msra.mxu0 0
        %928 = vmatprep.subr.bf16.mxu0 0
        %929 = vmatpush1.bf16.msra.mxu0 0
        %930 = vmatprep.subr.bf16.mxu0 0
        %931 = vmatpush1.bf16.msra.mxu0 0
        %932 = vmatprep.subr.bf16.mxu0 0
        %933 = vmatpush1.bf16.msra.mxu0 0
        %934 = vmatprep.subr.bf16.mxu0 0
        %935 = vmatpush1.bf16.msra.mxu0 0
        %936 = vmatprep.subr.bf16.mxu0 0
        %937 = vmatpush1.bf16.msra.mxu0 0
        %938 = vmatprep.subr.bf16.mxu0 0
        %939 = vmatpush1.bf16.msra.mxu0 0
        %940 = vmatprep.mubr.bf16.mxu0 0
        %941 = vmatmul.mubr.bf16.gmra.mrb[0].mxu0 %v902
        %v942 = vpop.f32.mrb[0].mxu0
        %v943 = vadd.f32 0.0, %v942
        %v944 = vpop.f32.mrb[0].mxu0
        %v945 = vpop.f32.mrb[0].mxu0
        %v946 = vpop.f32.mrb[0].mxu0
        %947 = vdwg.mxu0
        %948 = vrot.lane.b32.xlu0 %v777, 64
        %v949 = vpop.permute.xlu0 %948
        %v951 = vsel %vm780, %v898, 0
        %v954 = vsel %vm904, %v949, 0
        %956 = vmatprep.subr.bf16.mxu0 0
        %957 = vmatpush1.bf16.msra.mxu0 %v954
        %958 = vmatprep.subr.bf16.mxu0 0
        %959 = vmatpush1.bf16.msra.mxu0 0
        %960 = vmatprep.subr.bf16.mxu0 0
        %961 = vmatpush1.bf16.msra.mxu0 0
        %962 = vmatprep.subr.bf16.mxu0 0
        %963 = vmatpush1.bf16.msra.mxu0 0
        %964 = vmatprep.subr.bf16.mxu0 0
        %965 = vmatpush1.bf16.msra.mxu0 0
        %966 = vmatprep.subr.bf16.mxu0 0
        %967 = vmatpush1.bf16.msra.mxu0 0
        %968 = vmatprep.subr.bf16.mxu0 0
        %969 = vmatpush1.bf16.msra.mxu0 0
        %970 = vmatprep.subr.bf16.mxu0 0
        %971 = vmatpush1.bf16.msra.mxu0 0
        %972 = vmatprep.subr.bf16.mxu0 0
        %973 = vmatpush1.bf16.msra.mxu0 0
        %974 = vmatprep.subr.bf16.mxu0 0
        %975 = vmatpush1.bf16.msra.mxu0 0
        %976 = vmatprep.subr.bf16.mxu0 0
        %977 = vmatpush1.bf16.msra.mxu0 0
        %978 = vmatprep.subr.bf16.mxu0 0
        %979 = vmatpush1.bf16.msra.mxu0 0
        %980 = vmatprep.subr.bf16.mxu0 0
        %981 = vmatpush1.bf16.msra.mxu0 0
        %982 = vmatprep.subr.bf16.mxu0 0
        %983 = vmatpush1.bf16.msra.mxu0 0
        %984 = vmatprep.subr.bf16.mxu0 0
        %985 = vmatpush1.bf16.msra.mxu0 0
        %986 = vmatprep.subr.bf16.mxu0 0
        %987 = vmatpush1.bf16.msra.mxu0 0
        %988 = vmatprep.mubr.bf16.mxu0 0
        %989 = vmatmul.mubr.bf16.gmra.mrb[0].mxu0 %v951
        %v990 = vpop.f32.mrb[0].mxu0
        %v991 = vadd.f32 0.0, %v990
        %v992 = vpop.f32.mrb[0].mxu0
        %v993 = vpop.f32.mrb[0].mxu0
        %v994 = vpop.f32.mrb[0].mxu0
        %995 = vdwg.mxu0
        %v996 = vpack.c.bf16 %v943, %v943
        %v997 = vpack.c.bf16 %v991, %v991
        %vm998 = vcmask 60416
        %999 = vst.msk [vmem:[#allocation2] sm:$0xf] %vm998, %v996
        %1000 = vst.msk [vmem:[#allocation2 + $0x4] sm:$0xf] %vm998, %v997
        %1001 = vrot.lane.b32.xlu0 %v776, 120
        %v1002 = vpop.permute.xlu0 %1001
        %1003 = vrot.lane.b32.xlu0 %v776, 88
        %v1004 = vpop.permute.xlu0 %1003
        %v1006 = vsel %vm780, %v1002, 0
        %v1009 = vsel %vm780, %v1004, 0
        %1011 = vmatprep.subr.bf16.mxu0 0
        %1012 = vmatpush1.bf16.xpose.msra.mxu0 %v1009
        %1013 = vmatprep.subr.bf16.mxu0 0
        %1014 = vmatpush1.bf16.xpose.msra.mxu0 0
        %1015 = vmatprep.subr.bf16.mxu0 0
        %1016 = vmatpush1.bf16.xpose.msra.mxu0 0
        %1017 = vmatprep.subr.bf16.mxu0 0
        %1018 = vmatpush1.bf16.xpose.msra.mxu0 0
        %1019 = vmatprep.subr.bf16.mxu0 0
        %1020 = vmatpush1.bf16.xpose.msra.mxu0 0
        %1021 = vmatprep.subr.bf16.mxu0 0
        %1022 = vmatpush1.bf16.xpose.msra.mxu0 0
        %1023 = vmatprep.subr.bf16.mxu0 0
        %1024 = vmatpush1.bf16.xpose.msra.mxu0 0
        %1025 = vmatprep.subr.bf16.mxu0 0
        %1026 = vmatpush1.bf16.xpose.msra.mxu0 0
        %1027 = vmatprep.subr.bf16.mxu0 0
        %1028 = vmatpush1.bf16.xpose.msra.mxu0 0
        %1029 = vmatprep.subr.bf16.mxu0 0
        %1030 = vmatpush1.bf16.xpose.msra.mxu0 0
        %1031 = vmatprep.subr.bf16.mxu0 0
        %1032 = vmatpush1.bf16.xpose.msra.mxu0 0
        %1033 = vmatprep.subr.bf16.mxu0 0
        %1034 = vmatpush1.bf16.xpose.msra.mxu0 0
        %1035 = vmatprep.subr.bf16.mxu0 0
        %1036 = vmatpush1.bf16.xpose.msra.mxu0 0
        %1037 = vmatprep.subr.bf16.mxu0 0
        %1038 = vmatpush1.bf16.xpose.msra.mxu0 0
        %1039 = vmatprep.subr.bf16.mxu0 0
        %1040 = vmatpush1.bf16.xpose.msra.mxu0 0
        %1041 = vmatprep.subr.bf16.mxu0 0
        %1042 = vmatpush1.bf16.xpose.msra.mxu0 0
        %1043 = vmatprep.mubr.bf16.mxu0 0
        %1044 = vmatmul.mubr.bf16.gmra.mrb[0].mxu0 %v1006
        %v1045 = vpop.f32.mrb[0].mxu0
        %v1046 = vadd.f32 0.0, %v1045
        %v1047 = vpop.f32.mrb[0].mxu0
        %v1048 = vpop.f32.mrb[0].mxu0
        %v1049 = vpop.f32.mrb[0].mxu0
        %1050 = vdwg.mxu0
        %1051 = vrot.lane.b32.xlu0 %v777, 120
        %v1052 = vpop.permute.xlu0 %1051
        %1053 = vrot.lane.b32.xlu0 %v777, 88
        %v1054 = vpop.permute.xlu0 %1053
        %v1056 = vsel %vm780, %v1052, 0
        %v1059 = vsel %vm780, %v1054, 0
        %1061 = vmatprep.subr.bf16.mxu0 0
        %1062 = vmatpush1.bf16.xpose.msra.mxu0 %v1059
        %1063 = vmatprep.subr.bf16.mxu0 0
        %1064 = vmatpush1.bf16.xpose.msra.mxu0 0
        %1065 = vmatprep.subr.bf16.mxu0 0
        %1066 = vmatpush1.bf16.xpose.msra.mxu0 0
        %1067 = vmatprep.subr.bf16.mxu0 0
        %1068 = vmatpush1.bf16.xpose.msra.mxu0 0
        %1069 = vmatprep.subr.bf16.mxu0 0
        %1070 = vmatpush1.bf16.xpose.msra.mxu0 0
        %1071 = vmatprep.subr.bf16.mxu0 0
        %1072 = vmatpush1.bf16.xpose.msra.mxu0 0
        %1073 = vmatprep.subr.bf16.mxu0 0
        %1074 = vmatpush1.bf16.xpose.msra.mxu0 0
        %1075 = vmatprep.subr.bf16.mxu0 0
        %1076 = vmatpush1.bf16.xpose.msra.mxu0 0
        %1077 = vmatprep.subr.bf16.mxu0 0
        %1078 = vmatpush1.bf16.xpose.msra.mxu0 0
        %1079 = vmatprep.subr.bf16.mxu0 0
        %1080 = vmatpush1.bf16.xpose.msra.mxu0 0
        %1081 = vmatprep.subr.bf16.mxu0 0
        %1082 = vmatpush1.bf16.xpose.msra.mxu0 0
        %1083 = vmatprep.subr.bf16.mxu0 0
        %1084 = vmatpush1.bf16.xpose.msra.mxu0 0
        %1085 = vmatprep.subr.bf16.mxu0 0
        %1086 = vmatpush1.bf16.xpose.msra.mxu0 0
        %1087 = vmatprep.subr.bf16.mxu0 0
        %1088 = vmatpush1.bf16.xpose.msra.mxu0 0
        %1089 = vmatprep.subr.bf16.mxu0 0
        %1090 = vmatpush1.bf16.xpose.msra.mxu0 0
        %1091 = vmatprep.subr.bf16.mxu0 0
        %1092 = vmatpush1.bf16.xpose.msra.mxu0 0
        %1093 = vmatprep.mubr.bf16.mxu0 0
        %1094 = vmatmul.mubr.bf16.gmra.mrb[0].mxu0 %v1056
        %v1095 = vpop.f32.mrb[0].mxu0
        %v1096 = vadd.f32 0.0, %v1095
        %v1097 = vpop.f32.mrb[0].mxu0
        %v1098 = vpop.f32.mrb[0].mxu0
        %v1099 = vpop.f32.mrb[0].mxu0
        %1100 = vdwg.mxu0
        %v1101 = vsel %vm780, %v1046, -inf
        %1102 = vmax.xlane.f32.xlu0 %v1101
        %v1103 = vpop.xlane.xlu0 %1102
        %v1104 = vsel %vm780, %v1096, -inf
        %1105 = vmax.xlane.f32.xlu0 %v1104
        %v1106 = vpop.xlane.xlu0 %1105
        %v1107 = vsub.f32 %v1046, %v1103
        %v1108 = vsub.f32 %v1096, %v1106
        %v1109 = vmul.f32 %v1107, 1.442695
        %v1110 = vpow.pop %v1109
        %v1111 = vmul.f32 %v1108, 1.442695
        %v1112 = vpow.pop %v1111
        %v1113 = vsel %vm780, %v1110, 0.0
        %1114 = vadd.xlane.f32.xlu0 %v1113
        %v1115 = vpop.xlane.xlu0 %1114
        %v1116 = vsel %vm780, %v1112, 0.0
        %1117 = vadd.xlane.f32.xlu0 %v1116
        %v1118 = vpop.xlane.xlu0 %1117
        %v1119 = vrcp.pop %v1115
        %v1120 = vrcp.pop %v1118
        %v1121 = vmul.f32 %v1110, %v1119
        %v1122 = vmul.f32 %v1112, %v1120
        %v1123 = vpack.c.bf16 %v1121, %v1121
        %v1124 = vpack.c.bf16 %v1122, %v1122
        %1125 = vrot.lane.b32.xlu0 %v776, 56
        %v1126 = vpop.permute.xlu0 %1125
        %v1128 = vsel %vm780, %v1123, 0
        %v1131 = vsel %vm904, %v1126, 0
        %1133 = vmatprep.subr.bf16.mxu0 0
        %1134 = vmatpush1.bf16.msra.mxu0 %v1131
        %1135 = vmatprep.subr.bf16.mxu0 0
        %1136 = vmatpush1.bf16.msra.mxu0 0
        %1137 = vmatprep.subr.bf16.mxu0 0
        %1138 = vmatpush1.bf16.msra.mxu0 0
        %1139 = vmatprep.subr.bf16.mxu0 0
        %1140 = vmatpush1.bf16.msra.mxu0 0
        %1141 = vmatprep.subr.bf16.mxu0 0
        %1142 = vmatpush1.bf16.msra.mxu0 0
        %1143 = vmatprep.subr.bf16.mxu0 0
        %1144 = vmatpush1.bf16.msra.mxu0 0
        %1145 = vmatprep.subr.bf16.mxu0 0
        %1146 = vmatpush1.bf16.msra.mxu0 0
        %1147 = vmatprep.subr.bf16.mxu0 0
        %1148 = vmatpush1.bf16.msra.mxu0 0
        %1149 = vmatprep.subr.bf16.mxu0 0
        %1150 = vmatpush1.bf16.msra.mxu0 0
        %1151 = vmatprep.subr.bf16.mxu0 0
        %1152 = vmatpush1.bf16.msra.mxu0 0
        %1153 = vmatprep.subr.bf16.mxu0 0
        %1154 = vmatpush1.bf16.msra.mxu0 0
        %1155 = vmatprep.subr.bf16.mxu0 0
        %1156 = vmatpush1.bf16.msra.mxu0 0
        %1157 = vmatprep.subr.bf16.mxu0 0
        %1158 = vmatpush1.bf16.msra.mxu0 0
        %1159 = vmatprep.subr.bf16.mxu0 0
        %1160 = vmatpush1.bf16.msra.mxu0 0
        %1161 = vmatprep.subr.bf16.mxu0 0
        %1162 = vmatpush1.bf16.msra.mxu0 0
        %1163 = vmatprep.subr.bf16.mxu0 0
        %1164 = vmatpush1.bf16.msra.mxu0 0
        %1165 = vmatprep.mubr.bf16.mxu0 0
        %1166 = vmatmul.mubr.bf16.gmra.mrb[0].mxu0 %v1128
        %v1167 = vpop.f32.mrb[0].mxu0
        %v1168 = vadd.f32 0.0, %v1167
        %v1169 = vpop.f32.mrb[0].mxu0
        %v1170 = vpop.f32.mrb[0].mxu0
        %v1171 = vpop.f32.mrb[0].mxu0
        %1172 = vdwg.mxu0
        %1173 = vrot.lane.b32.xlu0 %v777, 56
        %v1174 = vpop.permute.xlu0 %1173
        %v1176 = vsel %vm780, %v1124, 0
        %v1179 = vsel %vm904, %v1174, 0
        %1181 = vmatprep.subr.bf16.mxu0 0
        %1182 = vmatpush1.bf16.msra.mxu0 %v1179
        %1183 = vmatprep.subr.bf16.mxu0 0
        %1184 = vmatpush1.bf16.msra.mxu0 0
        %1185 = vmatprep.subr.bf16.mxu0 0
        %1186 = vmatpush1.bf16.msra.mxu0 0
        %1187 = vmatprep.subr.bf16.mxu0 0
        %1188 = vmatpush1.bf16.msra.mxu0 0
        %1189 = vmatprep.subr.bf16.mxu0 0
        %1190 = vmatpush1.bf16.msra.mxu0 0
        %1191 = vmatprep.subr.bf16.mxu0 0
        %1192 = vmatpush1.bf16.msra.mxu0 0
        %1193 = vmatprep.subr.bf16.mxu0 0
        %1194 = vmatpush1.bf16.msra.mxu0 0
        %1195 = vmatprep.subr.bf16.mxu0 0
        %1196 = vmatpush1.bf16.msra.mxu0 0
        %1197 = vmatprep.subr.bf16.mxu0 0
        %1198 = vmatpush1.bf16.msra.mxu0 0
        %1199 = vmatprep.subr.bf16.mxu0 0
        %1200 = vmatpush1.bf16.msra.mxu0 0
        %1201 = vmatprep.subr.bf16.mxu0 0
        %1202 = vmatpush1.bf16.msra.mxu0 0
        %1203 = vmatprep.subr.bf16.mxu0 0
        %1204 = vmatpush1.bf16.msra.mxu0 0
        %1205 = vmatprep.subr.bf16.mxu0 0
        %1206 = vmatpush1.bf16.msra.mxu0 0
        %1207 = vmatprep.subr.bf16.mxu0 0
        %1208 = vmatpush1.bf16.msra.mxu0 0
        %1209 = vmatprep.subr.bf16.mxu0 0
        %1210 = vmatpush1.bf16.msra.mxu0 0
        %1211 = vmatprep.subr.bf16.mxu0 0
        %1212 = vmatpush1.bf16.msra.mxu0 0
        %1213 = vmatprep.mubr.bf16.mxu0 0
        %1214 = vmatmul.mubr.bf16.gmra.mrb[0].mxu0 %v1176
        %v1215 = vpop.f32.mrb[0].mxu0
        %v1216 = vadd.f32 0.0, %v1215
        %v1217 = vpop.f32.mrb[0].mxu0
        %v1218 = vpop.f32.mrb[0].mxu0
        %v1219 = vpop.f32.mrb[0].mxu0
        %1220 = vdwg.mxu0
        %v1221 = vpack.c.bf16 %v1168, %v1168
        %v1222 = vpack.c.bf16 %v1216, %v1216
        %v1225 = vunpack.c.l.b16 %v1221
        %v1226 = vunpack.c.l.b16 %v1222
        %v1227 = vpack.c.b16 %v1225, %v1225
        %v1228 = vpack.c.b16 %v1226, %v1226
        %1229 = vrot.lane.b32.xlu0 %v1227, 8
        %v1230 = vpop.permute.xlu0 %1229
        %1231 = vrot.lane.b32.xlu0 %v1228, 8
        %v1232 = vpop.permute.xlu0 %1231
        %vm1235 = vcmask 126016
        %1236 = vst.msk [vmem:[#allocation2] sm:$0xf] %vm1235, %v1230
        %1237 = vst.msk [vmem:[#allocation2 + $0x4] sm:$0xf] %vm1235, %v1232
        %1238 = vrot.lane.b32.xlu0 %v776, 112
        %v1239 = vpop.permute.xlu0 %1238
        %1240 = vrot.lane.b32.xlu0 %v776, 80
        %v1241 = vpop.permute.xlu0 %1240
        %v1243 = vsel %vm780, %v1239, 0
        %v1246 = vsel %vm780, %v1241, 0
        %1248 = vmatprep.subr.bf16.mxu0 0
        %1249 = vmatpush1.bf16.xpose.msra.mxu0 %v1246
        %1250 = vmatprep.subr.bf16.mxu0 0
        %1251 = vmatpush1.bf16.xpose.msra.mxu0 0
        %1252 = vmatprep.subr.bf16.mxu0 0
        %1253 = vmatpush1.bf16.xpose.msra.mxu0 0
        %1254 = vmatprep.subr.bf16.mxu0 0
        %1255 = vmatpush1.bf16.xpose.msra.mxu0 0
        %1256 = vmatprep.subr.bf16.mxu0 0
        %1257 = vmatpush1.bf16.xpose.msra.mxu0 0
        %1258 = vmatprep.subr.bf16.mxu0 0
        %1259 = vmatpush1.bf16.xpose.msra.mxu0 0
        %1260 = vmatprep.subr.bf16.mxu0 0
        %1261 = vmatpush1.bf16.xpose.msra.mxu0 0
        %1262 = vmatprep.subr.bf16.mxu0 0
        %1263 = vmatpush1.bf16.xpose.msra.mxu0 0
        %1264 = vmatprep.subr.bf16.mxu0 0
        %1265 = vmatpush1.bf16.xpose.msra.mxu0 0
        %1266 = vmatprep.subr.bf16.mxu0 0
        %1267 = vmatpush1.bf16.xpose.msra.mxu0 0
        %1268 = vmatprep.subr.bf16.mxu0 0
        %1269 = vmatpush1.bf16.xpose.msra.mxu0 0
        %1270 = vmatprep.subr.bf16.mxu0 0
        %1271 = vmatpush1.bf16.xpose.msra.mxu0 0
        %1272 = vmatprep.subr.bf16.mxu0 0
        %1273 = vmatpush1.bf16.xpose.msra.mxu0 0
        %1274 = vmatprep.subr.bf16.mxu0 0
        %1275 = vmatpush1.bf16.xpose.msra.mxu0 0
        %1276 = vmatprep.subr.bf16.mxu0 0
        %1277 = vmatpush1.bf16.xpose.msra.mxu0 0
        %1278 = vmatprep.subr.bf16.mxu0 0
        %1279 = vmatpush1.bf16.xpose.msra.mxu0 0
        %1280 = vmatprep.mubr.bf16.mxu0 0
        %1281 = vmatmul.mubr.bf16.gmra.mrb[0].mxu0 %v1243
        %v1282 = vpop.f32.mrb[0].mxu0
        %v1283 = vadd.f32 0.0, %v1282
        %v1284 = vpop.f32.mrb[0].mxu0
        %v1285 = vpop.f32.mrb[0].mxu0
        %v1286 = vpop.f32.mrb[0].mxu0
        %1287 = vdwg.mxu0
        %1288 = vrot.lane.b32.xlu0 %v777, 112
        %v1289 = vpop.permute.xlu0 %1288
        %1290 = vrot.lane.b32.xlu0 %v777, 80
        %v1291 = vpop.permute.xlu0 %1290
        %v1293 = vsel %vm780, %v1289, 0
        %v1296 = vsel %vm780, %v1291, 0
        %1298 = vmatprep.subr.bf16.mxu0 0
        %1299 = vmatpush1.bf16.xpose.msra.mxu0 %v1296
        %1300 = vmatprep.subr.bf16.mxu0 0
        %1301 = vmatpush1.bf16.xpose.msra.mxu0 0
        %1302 = vmatprep.subr.bf16.mxu0 0
        %1303 = vmatpush1.bf16.xpose.msra.mxu0 0
        %1304 = vmatprep.subr.bf16.mxu0 0
        %1305 = vmatpush1.bf16.xpose.msra.mxu0 0
        %1306 = vmatprep.subr.bf16.mxu0 0
        %1307 = vmatpush1.bf16.xpose.msra.mxu0 0
        %1308 = vmatprep.subr.bf16.mxu0 0
        %1309 = vmatpush1.bf16.xpose.msra.mxu0 0
        %1310 = vmatprep.subr.bf16.mxu0 0
        %1311 = vmatpush1.bf16.xpose.msra.mxu0 0
        %1312 = vmatprep.subr.bf16.mxu0 0
        %1313 = vmatpush1.bf16.xpose.msra.mxu0 0
        %1314 = vmatprep.subr.bf16.mxu0 0
        %1315 = vmatpush1.bf16.xpose.msra.mxu0 0
        %1316 = vmatprep.subr.bf16.mxu0 0
        %1317 = vmatpush1.bf16.xpose.msra.mxu0 0
        %1318 = vmatprep.subr.bf16.mxu0 0
        %1319 = vmatpush1.bf16.xpose.msra.mxu0 0
        %1320 = vmatprep.subr.bf16.mxu0 0
        %1321 = vmatpush1.bf16.xpose.msra.mxu0 0
        %1322 = vmatprep.subr.bf16.mxu0 0
        %1323 = vmatpush1.bf16.xpose.msra.mxu0 0
        %1324 = vmatprep.subr.bf16.mxu0 0
        %1325 = vmatpush1.bf16.xpose.msra.mxu0 0
        %1326 = vmatprep.subr.bf16.mxu0 0
        %1327 = vmatpush1.bf16.xpose.msra.mxu0 0
        %1328 = vmatprep.subr.bf16.mxu0 0
        %1329 = vmatpush1.bf16.xpose.msra.mxu0 0
        %1330 = vmatprep.mubr.bf16.mxu0 0
        %1331 = vmatmul.mubr.bf16.gmra.mrb[0].mxu0 %v1293
        %v1332 = vpop.f32.mrb[0].mxu0
        %v1333 = vadd.f32 0.0, %v1332
        %v1334 = vpop.f32.mrb[0].mxu0
        %v1335 = vpop.f32.mrb[0].mxu0
        %v1336 = vpop.f32.mrb[0].mxu0
        %1337 = vdwg.mxu0
        %v1338 = vsel %vm780, %v1283, -inf
        %1339 = vmax.xlane.f32.xlu0 %v1338
        %v1340 = vpop.xlane.xlu0 %1339
        %v1341 = vsel %vm780, %v1333, -inf
        %1342 = vmax.xlane.f32.xlu0 %v1341
        %v1343 = vpop.xlane.xlu0 %1342
        %v1344 = vsub.f32 %v1283, %v1340
        %v1345 = vsub.f32 %v1333, %v1343
        %v1346 = vmul.f32 %v1344, 1.442695
        %v1347 = vpow.pop %v1346
        %v1348 = vmul.f32 %v1345, 1.442695
        %v1349 = vpow.pop %v1348
        %v1350 = vsel %vm780, %v1347, 0.0
        %1351 = vadd.xlane.f32.xlu0 %v1350
        %v1352 = vpop.xlane.xlu0 %1351
        %v1353 = vsel %vm780, %v1349, 0.0
        %1354 = vadd.xlane.f32.xlu0 %v1353
        %v1355 = vpop.xlane.xlu0 %1354
        %v1356 = vrcp.pop %v1352
        %v1357 = vrcp.pop %v1355
        %v1358 = vmul.f32 %v1347, %v1356
        %v1359 = vmul.f32 %v1349, %v1357
        %v1360 = vpack.c.bf16 %v1358, %v1358
        %v1361 = vpack.c.bf16 %v1359, %v1359
        %1362 = vrot.lane.b32.xlu0 %v776, 48
        %v1363 = vpop.permute.xlu0 %1362
        %v1365 = vsel %vm780, %v1360, 0
        %v1368 = vsel %vm904, %v1363, 0
        %1370 = vmatprep.subr.bf16.mxu0 0
        %1371 = vmatpush1.bf16.msra.mxu0 %v1368
        %1372 = vmatprep.subr.bf16.mxu0 0
        %1373 = vmatpush1.bf16.msra.mxu0 0
        %1374 = vmatprep.subr.bf16.mxu0 0
        %1375 = vmatpush1.bf16.msra.mxu0 0
        %1376 = vmatprep.subr.bf16.mxu0 0
        %1377 = vmatpush1.bf16.msra.mxu0 0
        %1378 = vmatprep.subr.bf16.mxu0 0
        %1379 = vmatpush1.bf16.msra.mxu0 0
        %1380 = vmatprep.subr.bf16.mxu0 0
        %1381 = vmatpush1.bf16.msra.mxu0 0
        %1382 = vmatprep.subr.bf16.mxu0 0
        %1383 = vmatpush1.bf16.msra.mxu0 0
        %1384 = vmatprep.subr.bf16.mxu0 0
        %1385 = vmatpush1.bf16.msra.mxu0 0
        %1386 = vmatprep.subr.bf16.mxu0 0
        %1387 = vmatpush1.bf16.msra.mxu0 0
        %1388 = vmatprep.subr.bf16.mxu0 0
        %1389 = vmatpush1.bf16.msra.mxu0 0
        %1390 = vmatprep.subr.bf16.mxu0 0
        %1391 = vmatpush1.bf16.msra.mxu0 0
        %1392 = vmatprep.subr.bf16.mxu0 0
        %1393 = vmatpush1.bf16.msra.mxu0 0
        %1394 = vmatprep.subr.bf16.mxu0 0
        %1395 = vmatpush1.bf16.msra.mxu0 0
        %1396 = vmatprep.subr.bf16.mxu0 0
        %1397 = vmatpush1.bf16.msra.mxu0 0
        %1398 = vmatprep.subr.bf16.mxu0 0
        %1399 = vmatpush1.bf16.msra.mxu0 0
        %1400 = vmatprep.subr.bf16.mxu0 0
        %1401 = vmatpush1.bf16.msra.mxu0 0
        %1402 = vmatprep.mubr.bf16.mxu0 0
        %1403 = vmatmul.mubr.bf16.gmra.mrb[0].mxu0 %v1365
        %v1404 = vpop.f32.mrb[0].mxu0
        %v1405 = vadd.f32 0.0, %v1404
        %v1406 = vpop.f32.mrb[0].mxu0
        %v1407 = vpop.f32.mrb[0].mxu0
        %v1408 = vpop.f32.mrb[0].mxu0
        %1409 = vdwg.mxu0
        %1410 = vrot.lane.b32.xlu0 %v777, 48
        %v1411 = vpop.permute.xlu0 %1410
        %v1413 = vsel %vm780, %v1361, 0
        %v1416 = vsel %vm904, %v1411, 0
        %1418 = vmatprep.subr.bf16.mxu0 0
        %1419 = vmatpush1.bf16.msra.mxu0 %v1416
        %1420 = vmatprep.subr.bf16.mxu0 0
        %1421 = vmatpush1.bf16.msra.mxu0 0
        %1422 = vmatprep.subr.bf16.mxu0 0
        %1423 = vmatpush1.bf16.msra.mxu0 0
        %1424 = vmatprep.subr.bf16.mxu0 0
        %1425 = vmatpush1.bf16.msra.mxu0 0
        %1426 = vmatprep.subr.bf16.mxu0 0
        %1427 = vmatpush1.bf16.msra.mxu0 0
        %1428 = vmatprep.subr.bf16.mxu0 0
        %1429 = vmatpush1.bf16.msra.mxu0 0
        %1430 = vmatprep.subr.bf16.mxu0 0
        %1431 = vmatpush1.bf16.msra.mxu0 0
        %1432 = vmatprep.subr.bf16.mxu0 0
        %1433 = vmatpush1.bf16.msra.mxu0 0
        %1434 = vmatprep.subr.bf16.mxu0 0
        %1435 = vmatpush1.bf16.msra.mxu0 0
        %1436 = vmatprep.subr.bf16.mxu0 0
        %1437 = vmatpush1.bf16.msra.mxu0 0
        %1438 = vmatprep.subr.bf16.mxu0 0
        %1439 = vmatpush1.bf16.msra.mxu0 0
        %1440 = vmatprep.subr.bf16.mxu0 0
        %1441 = vmatpush1.bf16.msra.mxu0 0
        %1442 = vmatprep.subr.bf16.mxu0 0
        %1443 = vmatpush1.bf16.msra.mxu0 0
        %1444 = vmatprep.subr.bf16.mxu0 0
        %1445 = vmatpush1.bf16.msra.mxu0 0
        %1446 = vmatprep.subr.bf16.mxu0 0
        %1447 = vmatpush1.bf16.msra.mxu0 0
        %1448 = vmatprep.subr.bf16.mxu0 0
        %1449 = vmatpush1.bf16.msra.mxu0 0
        %1450 = vmatprep.mubr.bf16.mxu0 0
        %1451 = vmatmul.mubr.bf16.gmra.mrb[0].mxu0 %v1413
        %v1452 = vpop.f32.mrb[0].mxu0
        %v1453 = vadd.f32 0.0, %v1452
        %v1454 = vpop.f32.mrb[0].mxu0
        %v1455 = vpop.f32.mrb[0].mxu0
        %v1456 = vpop.f32.mrb[0].mxu0
        %1457 = vdwg.mxu0
        %v1458 = vpack.c.bf16 %v1405, %v1405
        %v1459 = vpack.c.bf16 %v1453, %v1453
        %v1462 = vunpack.c.l.b16 %v1458
        %v1463 = vunpack.c.l.b16 %v1459
        %v1464 = vpack.c.b16 %v1462, %v1462
        %v1465 = vpack.c.b16 %v1463, %v1463
        %1466 = vrot.lane.b32.xlu0 %v1464, 16
        %v1467 = vpop.permute.xlu0 %1466
        %1468 = vrot.lane.b32.xlu0 %v1465, 16
        %v1469 = vpop.permute.xlu0 %1468
        %vm1472 = vcmask 191616
        %1473 = vst.msk [vmem:[#allocation2] sm:$0xf] %vm1472, %v1467
        %1474 = vst.msk [vmem:[#allocation2 + $0x4] sm:$0xf] %vm1472, %v1469
        %1475 = vrot.lane.b32.xlu0 %v776, 104
        %v1476 = vpop.permute.xlu0 %1475
        %1477 = vrot.lane.b32.xlu0 %v776, 72
        %v1478 = vpop.permute.xlu0 %1477
        %v1480 = vsel %vm780, %v1476, 0
        %v1483 = vsel %vm780, %v1478, 0
        %1485 = vmatprep.subr.bf16.mxu0 0
        %1486 = vmatpush1.bf16.xpose.msra.mxu0 %v1483
        %1487 = vmatprep.subr.bf16.mxu0 0
        %1488 = vmatpush1.bf16.xpose.msra.mxu0 0
        %1489 = vmatprep.subr.bf16.mxu0 0
        %1490 = vmatpush1.bf16.xpose.msra.mxu0 0
        %1491 = vmatprep.subr.bf16.mxu0 0
        %1492 = vmatpush1.bf16.xpose.msra.mxu0 0
        %1493 = vmatprep.subr.bf16.mxu0 0
        %1494 = vmatpush1.bf16.xpose.msra.mxu0 0
        %1495 = vmatprep.subr.bf16.mxu0 0
        %1496 = vmatpush1.bf16.xpose.msra.mxu0 0
        %1497 = vmatprep.subr.bf16.mxu0 0
        %1498 = vmatpush1.bf16.xpose.msra.mxu0 0
        %1499 = vmatprep.subr.bf16.mxu0 0
        %1500 = vmatpush1.bf16.xpose.msra.mxu0 0
        %1501 = vmatprep.subr.bf16.mxu0 0
        %1502 = vmatpush1.bf16.xpose.msra.mxu0 0
        %1503 = vmatprep.subr.bf16.mxu0 0
        %1504 = vmatpush1.bf16.xpose.msra.mxu0 0
        %1505 = vmatprep.subr.bf16.mxu0 0
        %1506 = vmatpush1.bf16.xpose.msra.mxu0 0
        %1507 = vmatprep.subr.bf16.mxu0 0
        %1508 = vmatpush1.bf16.xpose.msra.mxu0 0
        %1509 = vmatprep.subr.bf16.mxu0 0
        %1510 = vmatpush1.bf16.xpose.msra.mxu0 0
        %1511 = vmatprep.subr.bf16.mxu0 0
        %1512 = vmatpush1.bf16.xpose.msra.mxu0 0
        %1513 = vmatprep.subr.bf16.mxu0 0
        %1514 = vmatpush1.bf16.xpose.msra.mxu0 0
        %1515 = vmatprep.subr.bf16.mxu0 0
        %1516 = vmatpush1.bf16.xpose.msra.mxu0 0
        %1517 = vmatprep.mubr.bf16.mxu0 0
        %1518 = vmatmul.mubr.bf16.gmra.mrb[0].mxu0 %v1480
        %v1519 = vpop.f32.mrb[0].mxu0
        %v1520 = vadd.f32 0.0, %v1519
        %v1521 = vpop.f32.mrb[0].mxu0
        %v1522 = vpop.f32.mrb[0].mxu0
        %v1523 = vpop.f32.mrb[0].mxu0
        %1524 = vdwg.mxu0
        %1525 = vrot.lane.b32.xlu0 %v777, 104
        %v1526 = vpop.permute.xlu0 %1525
        %1527 = vrot.lane.b32.xlu0 %v777, 72
        %v1528 = vpop.permute.xlu0 %1527
        %v1530 = vsel %vm780, %v1526, 0
        %v1533 = vsel %vm780, %v1528, 0
        %1535 = vmatprep.subr.bf16.mxu0 0
        %1536 = vmatpush1.bf16.xpose.msra.mxu0 %v1533
        %1537 = vmatprep.subr.bf16.mxu0 0
        %1538 = vmatpush1.bf16.xpose.msra.mxu0 0
        %1539 = vmatprep.subr.bf16.mxu0 0
        %1540 = vmatpush1.bf16.xpose.msra.mxu0 0
        %1541 = vmatprep.subr.bf16.mxu0 0
        %1542 = vmatpush1.bf16.xpose.msra.mxu0 0
        %1543 = vmatprep.subr.bf16.mxu0 0
        %1544 = vmatpush1.bf16.xpose.msra.mxu0 0
        %1545 = vmatprep.subr.bf16.mxu0 0
        %1546 = vmatpush1.bf16.xpose.msra.mxu0 0
        %1547 = vmatprep.subr.bf16.mxu0 0
        %1548 = vmatpush1.bf16.xpose.msra.mxu0 0
        %1549 = vmatprep.subr.bf16.mxu0 0
        %1550 = vmatpush1.bf16.xpose.msra.mxu0 0
        %1551 = vmatprep.subr.bf16.mxu0 0
        %1552 = vmatpush1.bf16.xpose.msra.mxu0 0
        %1553 = vmatprep.subr.bf16.mxu0 0
        %1554 = vmatpush1.bf16.xpose.msra.mxu0 0
        %1555 = vmatprep.subr.bf16.mxu0 0
        %1556 = vmatpush1.bf16.xpose.msra.mxu0 0
        %1557 = vmatprep.subr.bf16.mxu0 0
        %1558 = vmatpush1.bf16.xpose.msra.mxu0 0
        %1559 = vmatprep.subr.bf16.mxu0 0
        %1560 = vmatpush1.bf16.xpose.msra.mxu0 0
        %1561 = vmatprep.subr.bf16.mxu0 0
        %1562 = vmatpush1.bf16.xpose.msra.mxu0 0
        %1563 = vmatprep.subr.bf16.mxu0 0
        %1564 = vmatpush1.bf16.xpose.msra.mxu0 0
        %1565 = vmatprep.subr.bf16.mxu0 0
        %1566 = vmatpush1.bf16.xpose.msra.mxu0 0
        %1567 = vmatprep.mubr.bf16.mxu0 0
        %1568 = vmatmul.mubr.bf16.gmra.mrb[0].mxu0 %v1530
        %v1569 = vpop.f32.mrb[0].mxu0
        %v1570 = vadd.f32 0.0, %v1569
        %v1571 = vpop.f32.mrb[0].mxu0
        %v1572 = vpop.f32.mrb[0].mxu0
        %v1573 = vpop.f32.mrb[0].mxu0
        %1574 = vdwg.mxu0
        %v1575 = vsel %vm780, %v1520, -inf
        %1576 = vmax.xlane.f32.xlu0 %v1575
        %v1577 = vpop.xlane.xlu0 %1576
        %v1578 = vsel %vm780, %v1570, -inf
        %1579 = vmax.xlane.f32.xlu0 %v1578
        %v1580 = vpop.xlane.xlu0 %1579
        %v1581 = vsub.f32 %v1520, %v1577
        %v1582 = vsub.f32 %v1570, %v1580
        %v1583 = vmul.f32 %v1581, 1.442695
        %v1584 = vpow.pop %v1583
        %v1585 = vmul.f32 %v1582, 1.442695
        %v1586 = vpow.pop %v1585
        %v1587 = vsel %vm780, %v1584, 0.0
        %1588 = vadd.xlane.f32.xlu0 %v1587
        %v1589 = vpop.xlane.xlu0 %1588
        %v1590 = vsel %vm780, %v1586, 0.0
        %1591 = vadd.xlane.f32.xlu0 %v1590
        %v1592 = vpop.xlane.xlu0 %1591
        %v1593 = vrcp.pop %v1589
        %v1594 = vrcp.pop %v1592
        %v1595 = vmul.f32 %v1584, %v1593
        %v1596 = vmul.f32 %v1586, %v1594
        %v1597 = vpack.c.bf16 %v1595, %v1595
        %v1598 = vpack.c.bf16 %v1596, %v1596
        %1599 = vrot.lane.b32.xlu0 %v776, 40
        %v1600 = vpop.permute.xlu0 %1599
        %v1602 = vsel %vm780, %v1597, 0
        %v1605 = vsel %vm904, %v1600, 0
        %1607 = vmatprep.subr.bf16.mxu0 0
        %1608 = vmatpush1.bf16.msra.mxu0 %v1605
        %1609 = vmatprep.subr.bf16.mxu0 0
        %1610 = vmatpush1.bf16.msra.mxu0 0
        %1611 = vmatprep.subr.bf16.mxu0 0
        %1612 = vmatpush1.bf16.msra.mxu0 0
        %1613 = vmatprep.subr.bf16.mxu0 0
        %1614 = vmatpush1.bf16.msra.mxu0 0
        %1615 = vmatprep.subr.bf16.mxu0 0
        %1616 = vmatpush1.bf16.msra.mxu0 0
        %1617 = vmatprep.subr.bf16.mxu0 0
        %1618 = vmatpush1.bf16.msra.mxu0 0
        %1619 = vmatprep.subr.bf16.mxu0 0
        %1620 = vmatpush1.bf16.msra.mxu0 0
        %1621 = vmatprep.subr.bf16.mxu0 0
        %1622 = vmatpush1.bf16.msra.mxu0 0
        %1623 = vmatprep.subr.bf16.mxu0 0
        %1624 = vmatpush1.bf16.msra.mxu0 0
        %1625 = vmatprep.subr.bf16.mxu0 0
        %1626 = vmatpush1.bf16.msra.mxu0 0
        %1627 = vmatprep.subr.bf16.mxu0 0
        %1628 = vmatpush1.bf16.msra.mxu0 0
        %1629 = vmatprep.subr.bf16.mxu0 0
        %1630 = vmatpush1.bf16.msra.mxu0 0
        %1631 = vmatprep.subr.bf16.mxu0 0
        %1632 = vmatpush1.bf16.msra.mxu0 0
        %1633 = vmatprep.subr.bf16.mxu0 0
        %1634 = vmatpush1.bf16.msra.mxu0 0
        %1635 = vmatprep.subr.bf16.mxu0 0
        %1636 = vmatpush1.bf16.msra.mxu0 0
        %1637 = vmatprep.subr.bf16.mxu0 0
        %1638 = vmatpush1.bf16.msra.mxu0 0
        %1639 = vmatprep.mubr.bf16.mxu0 0
        %1640 = vmatmul.mubr.bf16.gmra.mrb[0].mxu0 %v1602
        %v1641 = vpop.f32.mrb[0].mxu0
        %v1642 = vadd.f32 0.0, %v1641
        %v1643 = vpop.f32.mrb[0].mxu0
        %v1644 = vpop.f32.mrb[0].mxu0
        %v1645 = vpop.f32.mrb[0].mxu0
        %1646 = vdwg.mxu0
        %1647 = vrot.lane.b32.xlu0 %v777, 40
        %v1648 = vpop.permute.xlu0 %1647
        %v1650 = vsel %vm780, %v1598, 0
        %v1653 = vsel %vm904, %v1648, 0
        %1655 = vmatprep.subr.bf16.mxu0 0
        %1656 = vmatpush1.bf16.msra.mxu0 %v1653
        %1657 = vmatprep.subr.bf16.mxu0 0
        %1658 = vmatpush1.bf16.msra.mxu0 0
        %1659 = vmatprep.subr.bf16.mxu0 0
        %1660 = vmatpush1.bf16.msra.mxu0 0
        %1661 = vmatprep.subr.bf16.mxu0 0
        %1662 = vmatpush1.bf16.msra.mxu0 0
        %1663 = vmatprep.subr.bf16.mxu0 0
        %1664 = vmatpush1.bf16.msra.mxu0 0
        %1665 = vmatprep.subr.bf16.mxu0 0
        %1666 = vmatpush1.bf16.msra.mxu0 0
        %1667 = vmatprep.subr.bf16.mxu0 0
        %1668 = vmatpush1.bf16.msra.mxu0 0
        %1669 = vmatprep.subr.bf16.mxu0 0
        %1670 = vmatpush1.bf16.msra.mxu0 0
        %1671 = vmatprep.subr.bf16.mxu0 0
        %1672 = vmatpush1.bf16.msra.mxu0 0
        %1673 = vmatprep.subr.bf16.mxu0 0
        %1674 = vmatpush1.bf16.msra.mxu0 0
        %1675 = vmatprep.subr.bf16.mxu0 0
        %1676 = vmatpush1.bf16.msra.mxu0 0
        %1677 = vmatprep.subr.bf16.mxu0 0
        %1678 = vmatpush1.bf16.msra.mxu0 0
        %1679 = vmatprep.subr.bf16.mxu0 0
        %1680 = vmatpush1.bf16.msra.mxu0 0
        %1681 = vmatprep.subr.bf16.mxu0 0
        %1682 = vmatpush1.bf16.msra.mxu0 0
        %1683 = vmatprep.subr.bf16.mxu0 0
        %1684 = vmatpush1.bf16.msra.mxu0 0
        %1685 = vmatprep.subr.bf16.mxu0 0
        %1686 = vmatpush1.bf16.msra.mxu0 0
        %1687 = vmatprep.mubr.bf16.mxu0 0
        %1688 = vmatmul.mubr.bf16.gmra.mrb[0].mxu0 %v1650
        %v1689 = vpop.f32.mrb[0].mxu0
        %v1690 = vadd.f32 0.0, %v1689
        %v1691 = vpop.f32.mrb[0].mxu0
        %v1692 = vpop.f32.mrb[0].mxu0
        %v1693 = vpop.f32.mrb[0].mxu0
        %1694 = vdwg.mxu0
        %v1695 = vpack.c.bf16 %v1642, %v1642
        %v1696 = vpack.c.bf16 %v1690, %v1690
        %v1699 = vunpack.c.l.b16 %v1695
        %v1700 = vunpack.c.l.b16 %v1696
        %v1701 = vpack.c.b16 %v1699, %v1699
        %v1702 = vpack.c.b16 %v1700, %v1700
        %1703 = vrot.lane.b32.xlu0 %v1701, 24
        %v1704 = vpop.permute.xlu0 %1703
        %1705 = vrot.lane.b32.xlu0 %v1702, 24
        %v1706 = vpop.permute.xlu0 %1705
        %vm1709 = vcmask 257216
        %1710 = vst.msk [vmem:[#allocation2] sm:$0xf] %vm1709, %v1704
        %1711 = vst.msk [vmem:[#allocation2 + $0x4] sm:$0xf] %vm1709, %v1706
        %v1712 = vld [vmem:[#allocation2] sm:$0xf]
        %v1713 = vld [vmem:[#allocation2 + $0x4] sm:$0xf]
        %v1714 = vld [vmem:[%s619] sm:$0xf]
        %v1715 = vld [vmem:[%s619 + $0x4] sm:$0xf]
        %v1716 = vld [vmem:[%s619 + $0x8] sm:$0xf]
        %v1717 = vld [vmem:[%s619 + $0xc] sm:$0xf]
        %v1718 = vld [vmem:[%s622] sm:$0x1]
        %v1720 = vlaneseq
        %v1721 = vshrl.u32 %v1720, 7
        %v1722 = vsub.s32 0, %v1721
        %v1723 = vrot.slane %v1718, %v1722
        %v1727 = vunpack.c.l.b16 %v1712
        %v1728 = vunpack.c.l.b16 %v1713
        %v1729 = vpack.c.b16 %v1728, %v1727
        %v1734 = vunpack.c.l.b16 %v1714
        %v1735 = vunpack.c.l.b16 %v1715
        %v1736 = vunpack.c.l.b16 %v1716
        %v1737 = vunpack.c.l.b16 %v1717
        %v1738 = vpack.c.b16 %v1735, %v1734
        %v1739 = vpack.c.b16 %v1737, %v1736
        %v1743 = vsel %vm660, %v1729, 0
        %1745 = vmatprep.subr.bf16.mxu0 0
        %1746 = vmatpush1.bf16.msra.mxu0 %v1738
        %1747 = vmatprep.subr.bf16.mxu0 0
        %1748 = vmatpush1.bf16.msra.mxu0 %v1739
        %1749 = vmatprep.subr.bf16.mxu0 0
        %1750 = vmatpush1.bf16.msra.mxu0 0
        %1751 = vmatprep.subr.bf16.mxu0 0
        %1752 = vmatpush1.bf16.msra.mxu0 0
        %1753 = vmatprep.subr.bf16.mxu0 0
        %1754 = vmatpush1.bf16.msra.mxu0 0
        %1755 = vmatprep.subr.bf16.mxu0 0
        %1756 = vmatpush1.bf16.msra.mxu0 0
        %1757 = vmatprep.subr.bf16.mxu0 0
        %1758 = vmatpush1.bf16.msra.mxu0 0
        %1759 = vmatprep.subr.bf16.mxu0 0
        %1760 = vmatpush1.bf16.msra.mxu0 0
        %1761 = vmatprep.subr.bf16.mxu0 0
        %1762 = vmatpush1.bf16.msra.mxu0 0
        %1763 = vmatprep.subr.bf16.mxu0 0
        %1764 = vmatpush1.bf16.msra.mxu0 0
        %1765 = vmatprep.subr.bf16.mxu0 0
        %1766 = vmatpush1.bf16.msra.mxu0 0
        %1767 = vmatprep.subr.bf16.mxu0 0
        %1768 = vmatpush1.bf16.msra.mxu0 0
        %1769 = vmatprep.subr.bf16.mxu0 0
        %1770 = vmatpush1.bf16.msra.mxu0 0
        %1771 = vmatprep.subr.bf16.mxu0 0
        %1772 = vmatpush1.bf16.msra.mxu0 0
        %1773 = vmatprep.subr.bf16.mxu0 0
        %1774 = vmatpush1.bf16.msra.mxu0 0
        %1775 = vmatprep.subr.bf16.mxu0 0
        %1776 = vmatpush1.bf16.msra.mxu0 0
        %1777 = vmatprep.mubr.bf16.mxu0 0
        %1778 = vmatmul.mubr.bf16.gmra.mrb[0].mxu0 %v1743
        %v1779 = vpop.f32.mrb[0].mxu0
        %v1780 = vadd.f32 %v1723, %v1779
        %v1781 = vpop.f32.mrb[0].mxu0
        %v1782 = vpop.f32.mrb[0].mxu0
        %v1783 = vadd.f32 %v1723, %v1782
        %v1784 = vpop.f32.mrb[0].mxu0
        %1785 = vdwg.mxu0
        %v1786 = vadd.f32 %v656, %v1780
        %v1787 = vadd.f32 %v657, %v1783
        %v1788 = vld [vmem:[%s625] sm:$0x1]
        %v1789 = vld [vmem:[%s628] sm:$0x1]
        %v1790 = vsel %vm660, %v1786, 0.0
        %1791 = vadd.xlane.f32.xlu0 %v1790
        %v1792 = vpop.xlane.xlu0 %1791
        %v1793 = vsel %vm660, %v1787, 0.0
        %1794 = vadd.xlane.f32.xlu0 %v1793
        %v1795 = vpop.xlane.xlu0 %1794
        %v1796 = vmul.f32 %v1792, %v667
        %v1797 = vmul.f32 %v1795, %v667
        %v1798 = vsub.f32 %v1786, %v1796
        %v1799 = vsub.f32 %v1787, %v1797
        %v1800 = vmul.f32 %v1798, %v1798
        %v1801 = vmul.f32 %v1799, %v1799
        %v1802 = vsel %vm660, %v1800, 0.0
        %1803 = vadd.xlane.f32.xlu0 %v1802
        %v1804 = vpop.xlane.xlu0 %1803
        %v1805 = vsel %vm660, %v1801, 0.0
        %1806 = vadd.xlane.f32.xlu0 %v1805
        %v1807 = vpop.xlane.xlu0 %1806
        %v1808 = vmul.f32 %v1804, %v667
        %v1809 = vmul.f32 %v1807, %v667
        %v1810 = vadd.f32 %v1808, 1e-05
        %v1811 = vadd.f32 %v1809, 1e-05
        %v1812 = vrsqrt.pop %v1810
        %v1813 = vrsqrt.pop %v1811
        %v1814 = vmul.f32 %v1798, %v1812
        %v1815 = vmul.f32 %v1799, %v1813
        %v1817 = vlaneseq
        %v1818 = vshrl.u32 %v1817, 7
        %v1819 = vsub.s32 0, %v1818
        %v1820 = vrot.slane %v1788, %v1819
        %v1822 = vmul.f32 %v1814, %v1820
        %v1823 = vmul.f32 %v1815, %v1820
        %v1825 = vlaneseq
        %v1826 = vshrl.u32 %v1825, 7
        %v1827 = vsub.s32 0, %v1826
        %v1828 = vrot.slane %v1789, %v1827
        %v1830 = vadd.f32 %v1822, %v1828
        %v1831 = vadd.f32 %v1823, %v1828
        %v1832 = vpack.c.bf16 %v1831, %v1830
        %v1833 = vld [vmem:[%s644] sm:$0x1]
        %v1835 = vlaneseq
        %v1836 = vshrl.u32 %v1835, 7
        %v1837 = vsub.s32 0, %v1836
        %v1838 = vrot.slane %v1833, %v1837
        %v1840 = vadd.f32 %v1838, 0.0
        %v1841 = vld [vmem:[%s633] sm:$0xf]
        %v1842 = vld [vmem:[%s633 + $0x4] sm:$0xf]
        %v1843 = vld [vmem:[%s633 + $0x8] sm:$0xf]
        %v1844 = vld [vmem:[%s633 + $0xc] sm:$0xf]
        %v1845 = vld [vmem:[%s636] sm:$0x1]
        %v1847 = vlaneseq
        %v1848 = vshrl.u32 %v1847, 7
        %v1849 = vsub.s32 0, %v1848
        %v1850 = vrot.slane %v1845, %v1849
        %v1856 = vunpack.c.l.b16 %v1841
        %v1857 = vunpack.c.l.b16 %v1842
        %v1858 = vunpack.c.l.b16 %v1843
        %v1859 = vunpack.c.l.b16 %v1844
        %v1860 = vpack.c.b16 %v1857, %v1856
        %v1861 = vpack.c.b16 %v1859, %v1858
        %v1865 = vsel %vm660, %v1832, 0
        %1867 = vmatprep.subr.bf16.mxu0 0
        %1868 = vmatpush1.bf16.msra.mxu0 %v1860
        %1869 = vmatprep.subr.bf16.mxu0 0
        %1870 = vmatpush1.bf16.msra.mxu0 %v1861
        %1871 = vmatprep.subr.bf16.mxu0 0
        %1872 = vmatpush1.bf16.msra.mxu0 0
        %1873 = vmatprep.subr.bf16.mxu0 0
        %1874 = vmatpush1.bf16.msra.mxu0 0
        %1875 = vmatprep.subr.bf16.mxu0 0
        %1876 = vmatpush1.bf16.msra.mxu0 0
        %1877 = vmatprep.subr.bf16.mxu0 0
        %1878 = vmatpush1.bf16.msra.mxu0 0
        %1879 = vmatprep.subr.bf16.mxu0 0
        %1880 = vmatpush1.bf16.msra.mxu0 0
        %1881 = vmatprep.subr.bf16.mxu0 0
        %1882 = vmatpush1.bf16.msra.mxu0 0
        %1883 = vmatprep.subr.bf16.mxu0 0
        %1884 = vmatpush1.bf16.msra.mxu0 0
        %1885 = vmatprep.subr.bf16.mxu0 0
        %1886 = vmatpush1.bf16.msra.mxu0 0
        %1887 = vmatprep.subr.bf16.mxu0 0
        %1888 = vmatpush1.bf16.msra.mxu0 0
        %1889 = vmatprep.subr.bf16.mxu0 0
        %1890 = vmatpush1.bf16.msra.mxu0 0
        %1891 = vmatprep.subr.bf16.mxu0 0
        %1892 = vmatpush1.bf16.msra.mxu0 0
        %1893 = vmatprep.subr.bf16.mxu0 0
        %1894 = vmatpush1.bf16.msra.mxu0 0
        %1895 = vmatprep.subr.bf16.mxu0 0
        %1896 = vmatpush1.bf16.msra.mxu0 0
        %1897 = vmatprep.subr.bf16.mxu0 0
        %1898 = vmatpush1.bf16.msra.mxu0 0
        %1899 = vmatprep.mubr.bf16.mxu0 0
        %1900 = vmatmul.mubr.bf16.gmra.mrb[0].mxu0 %v1865
        %v1901 = vpop.f32.mrb[0].mxu0
        %v1902 = vadd.f32 %v1850, %v1901
        %v1903 = vpop.f32.mrb[0].mxu0
        %v1904 = vpop.f32.mrb[0].mxu0
        %v1905 = vadd.f32 %v1850, %v1904
        %v1906 = vpop.f32.mrb[0].mxu0
        %1907 = vdwg.mxu0
        %v1908 = vmul.f32 %v1902, 1.702
        %v1909 = vmul.f32 %v1905, 1.702
        %v1910 = vxor.u32 %v1908, 2147483648
        %v1911 = vxor.u32 %v1909, 2147483648
        %v1912 = vmul.f32 %v1910, 1.442695
        %v1913 = vpow.pop %v1912
        %v1914 = vmul.f32 %v1911, 1.442695
        %v1915 = vpow.pop %v1914
        %v1916 = vadd.f32 %v1913, 1.0
        %v1917 = vadd.f32 %v1915, 1.0
        %v1918 = vrcp.pop %v1916
        %v1919 = vmul.f32 1.0, %v1918
        %v1920 = vrcp.pop %v1917
        %v1921 = vmul.f32 1.0, %v1920
        %v1922 = vmul.f32 %v1902, %v1919
        %v1923 = vmul.f32 %v1905, %v1921
        %v1924 = vpack.c.bf16 %v1923, %v1922
        %v1925 = vld [vmem:[%s641] sm:$0xf]
        %v1926 = vld [vmem:[%s641 + $0x4] sm:$0xf]
        %v1927 = vld [vmem:[%s641 + $0x8] sm:$0xf]
        %v1928 = vld [vmem:[%s641 + $0xc] sm:$0xf]
        %v1929 = vld [vmem:[%s641 + $0x10] sm:$0xf]
        %v1930 = vld [vmem:[%s641 + $0x14] sm:$0xf]
        %v1931 = vld [vmem:[%s641 + $0x18] sm:$0xf]
        %v1932 = vld [vmem:[%s641 + $0x1c] sm:$0xf]
        %v1933 = vld [vmem:[%s641 + $0x20] sm:$0xf]
        %v1934 = vld [vmem:[%s641 + $0x24] sm:$0xf]
        %v1935 = vld [vmem:[%s641 + $0x28] sm:$0xf]
        %v1936 = vld [vmem:[%s641 + $0x2c] sm:$0xf]
        %v1937 = vld [vmem:[%s641 + $0x30] sm:$0xf]
        %v1938 = vld [vmem:[%s641 + $0x34] sm:$0xf]
        %v1939 = vld [vmem:[%s641 + $0x38] sm:$0xf]
        %v1940 = vld [vmem:[%s641 + $0x3c] sm:$0xf]
        %v1957 = vunpack.c.l.b16 %v1925
        %v1958 = vunpack.c.l.b16 %v1926
        %v1959 = vunpack.c.l.b16 %v1927
        %v1960 = vunpack.c.l.b16 %v1928
        %v1961 = vunpack.c.l.b16 %v1929
        %v1962 = vunpack.c.l.b16 %v1930
        %v1963 = vunpack.c.l.b16 %v1931
        %v1964 = vunpack.c.l.b16 %v1932
        %v1965 = vunpack.c.l.b16 %v1933
        %v1966 = vunpack.c.l.b16 %v1934
        %v1967 = vunpack.c.l.b16 %v1935
        %v1968 = vunpack.c.l.b16 %v1936
        %v1969 = vunpack.c.l.b16 %v1937
        %v1970 = vunpack.c.l.b16 %v1938
        %v1971 = vunpack.c.l.b16 %v1939
        %v1972 = vunpack.c.l.b16 %v1940
        %v1973 = vpack.c.b16 %v1958, %v1957
        %v1974 = vpack.c.b16 %v1960, %v1959
        %v1975 = vpack.c.b16 %v1962, %v1961
        %v1976 = vpack.c.b16 %v1964, %v1963
        %v1977 = vpack.c.b16 %v1966, %v1965
        %v1978 = vpack.c.b16 %v1968, %v1967
        %v1979 = vpack.c.b16 %v1970, %v1969
        %v1980 = vpack.c.b16 %v1972, %v1971
        %1989 = vmatprep.subr.bf16.mxu0 0
        %1990 = vmatpush1.bf16.msra.mxu0 %v1973
        %1991 = vmatprep.subr.bf16.mxu0 0
        %1992 = vmatpush1.bf16.msra.mxu0 %v1974
        %1993 = vmatprep.subr.bf16.mxu0 0
        %1994 = vmatpush1.bf16.msra.mxu0 %v1975
        %1995 = vmatprep.subr.bf16.mxu0 0
        %1996 = vmatpush1.bf16.msra.mxu0 %v1976
        %1997 = vmatprep.subr.bf16.mxu0 0
        %1998 = vmatpush1.bf16.msra.mxu0 %v1977
        %1999 = vmatprep.subr.bf16.mxu0 0
        %2000 = vmatpush1.bf16.msra.mxu0 %v1978
        %2001 = vmatprep.subr.bf16.mxu0 0
        %2002 = vmatpush1.bf16.msra.mxu0 %v1979
        %2003 = vmatprep.subr.bf16.mxu0 0
        %2004 = vmatpush1.bf16.msra.mxu0 %v1980
        %2005 = vmatprep.subr.bf16.mxu0 0
        %2006 = vmatpush1.bf16.msra.mxu0 0
        %2007 = vmatprep.subr.bf16.mxu0 0
        %2008 = vmatpush1.bf16.msra.mxu0 0
        %2009 = vmatprep.subr.bf16.mxu0 0
        %2010 = vmatpush1.bf16.msra.mxu0 0
        %2011 = vmatprep.subr.bf16.mxu0 0
        %2012 = vmatpush1.bf16.msra.mxu0 0
        %2013 = vmatprep.subr.bf16.mxu0 0
        %2014 = vmatpush1.bf16.msra.mxu0 0
        %2015 = vmatprep.subr.bf16.mxu0 0
        %2016 = vmatpush1.bf16.msra.mxu0 0
        %2017 = vmatprep.subr.bf16.mxu0 0
        %2018 = vmatpush1.bf16.msra.mxu0 0
        %2019 = vmatprep.subr.bf16.mxu0 0
        %2020 = vmatpush1.bf16.msra.mxu0 0
        %2021 = vmatprep.mubr.bf16.mxu0 0
        %2022 = vmatmul.mubr.bf16.gmra.mrb[0].mxu0 %v1924
        %v2023 = vpop.f32.mrb[0].mxu0
        %v2024 = vadd.f32 0.0, %v2023
        %v2025 = vpop.f32.mrb[0].mxu0
        %v2026 = vpop.f32.mrb[0].mxu0
        %v2027 = vadd.f32 0.0, %v2026
        %v2028 = vpop.f32.mrb[0].mxu0
        %2029 = vdwg.mxu0
        %v2030 = vadd.f32 %v1840, %v2024
        %v2031 = vadd.f32 %v1840, %v2027
        %v2032 = vadd.f32 %v1786, %v2030
        %v2033 = vadd.f32 %v1787, %v2031
        %2034 = vst.msk [vmem:[%s594] sm:$0xff] %vm660, %v2032
        %2035 = vst.msk [vmem:[%s594 + $0x8] sm:$0xff] %vm660, %v2033
        %s2036 = sand.u32 %s385, 1
        %s2037 = scalar_lea.sflag [#allocation4], %s2036
        %s2038 = sand.u32 %s385, 1
        %s2039 = smul.addr %s2038, 16
        %s2040 = scalar_lea.vmem [#allocation3], %s2039
        // Predicated region
        $region77: #{tpu_custom_call.1} parent=71 // pred_check
          %p2041 = pneg %p395
        $region78: #{tpu_custom_call.1} parent=71 // pred_check_branch
          %2043 = sbr.rel (%p2041) target = $region80
        $region79: #{tpu_custom_call.1} parent=71 // pred_region
          %s2044 = smul.u32 2, %s31
          %s2046 = ssub.s32 256, 256
          %2047 = vsyncadd %s2037, %s2046
          %s2048 = smul.addr %s2044, 128
          %s2049 = scalar_lea.hbm %s13, %s2048
          %s2050 = sshll.u32 %s2040, 4
          %s2051 = int_to_ptr.vmem [resolvable:$true] %s2050
          %2056 = dma.vmem_to_hbm [thread:$0]  %s2051, 256, %s2049, %s2037, 128, 128, 8
        $region80: #{tpu_custom_call.1} parent=71 // pred_fallthru
          _
      $region72: #{tpu_custom_call.1} parent=5 // pred_fallthru
        _
      %p2057 = scmp.le.s32.totalorder 2, %s22
      // Predicated region
      $region81: #{tpu_custom_call.1} parent=5 // pred_check
        %p2058 = pneg %p2057
      $region82: #{tpu_custom_call.1} parent=5 // pred_check_branch
        %2060 = sbr.rel (%p2058) target = $region84
      $region83: #{tpu_custom_call.1} parent=5 // pred_region
        %s2061 = ssub.s32 %s22, 2
        // Predicated region
        $region85: #{tpu_custom_call.1} parent=83 // pred_check
          %p2062 = pneg %p401
        $region86: #{tpu_custom_call.1} parent=83 // pred_check_branch
          %2064 = sbr.rel (%p2062) target = $region88
        $region87: #{tpu_custom_call.1} parent=83 // pred_region
          %s2065 = sand.u32 %s386, 1
          %s2066 = scalar_lea.sflag [#allocation4], %s2065
          %s2067 = sand.u32 %s386, 1
          %s2068 = smul.addr %s2067, 16
          %s2069 = scalar_lea.vmem [#allocation3], %s2068
          %2070 = dma.done %s2066, 256
        $region88: #{tpu_custom_call.1} parent=83 // pred_fallthru
          _
      $region84: #{tpu_custom_call.1} parent=5 // pred_fallthru
        _
    $region6: #{tpu_custom_call.1} parent=1 // loop_footer
      %s26 = sadd.s32 1, %s22
    $region7: #{tpu_custom_call.1} parent=1 // loop_footer_branch
      %21 = sbr.rel target = $region3
    $region8: #{tpu_custom_call.1} parent=1 // loop_exit
      _
    %2071 = vsyncpa [#allocation4], 1
    %s2072 = scalar_lea.sflag [#allocation4], 1
    %2073 = vsyncpa %s2072, 1

</llo_original>
